<compile_context>
chip_gen: v7x
topology: tpu7x:2x2x1
jax: 0.10.0
libtpu: 0.0.40
codegen_flags: <defaults>
</compile_context>

<pallas_src>
import jax
import jax.numpy as jnp
import numpy as np
from jax.experimental import pallas as pl
from jax.experimental.pallas import tpu as pltpu


def lstm_classifier_kernel(
    ids_ref,    # (T*B, 1) int32  token ids, time-major, forward sequence order
    exf_ref,    # (V, 8H)  precomputed emb @ W_ih_fwd (spread into interleaved fwd cols) + bias
    exb_ref,    # (V, 8H)  precomputed emb @ W_ih_bwd (spread into interleaved bwd cols)
    whh_ref,    # (2H, 8H) block-diagonal recurrent weights, interleaved columns
    fcw_ref,    # (2H, O)  final linear weight (transposed)
    fcb_ref,    # (1, O)   final linear bias
    out_ref,    # (B, O)
):
    B = out_ref.shape[0]
    TB = ids_ref.shape[0]
    T = TB // B
    H2 = whh_ref.shape[0]          # 2H; lanes [0:H] = forward, [H:2H] = backward
    V = exf_ref.shape[0]

    # ---- Prologue: fused embedding gather + input projection (+bias, already folded in). ----
    # onehot(ids) @ (emb @ W_ih + b) == W_ih^T emb[ids] + b : no (B,T,E) float intermediate,
    # no per-step bias broadcast, and the serial loop below only does h @ W_hh + gate math.
    vocab_iota = jax.lax.broadcasted_iota(jnp.int32, (TB, V), 1)
    onehot = (ids_ref[...] == vocab_iota).astype(jnp.float32)                 # (TB, V)

    gx_f = jnp.dot(onehot, exf_ref[...], preferred_element_type=jnp.float32)  # (TB, 8H)
    gx_b = jnp.dot(onehot, exb_ref[...], preferred_element_type=jnp.float32)  # (TB, 8H)

    whh = whh_ref[...]                                                        # (2H, 8H)

    # ---- Recurrence: fully unrolled, both directions live side-by-side in lanes. ----
    # Step t consumes x_t for the forward chain and x_{T-1-t} for the backward chain, which
    # is just row block (T-1-t) of the SAME one-hot projection (static slices, T is static).
    h = jnp.zeros((B, H2), jnp.float32)
    c = jnp.zeros((B, H2), jnp.float32)
    for t in range(T):
        g = (gx_f[t * B:(t + 1) * B, :]
             + gx_b[(T - 1 - t) * B:(T - t) * B, :]
             + jnp.dot(h, whh, preferred_element_type=jnp.float32))           # (B, 8H)
        i_g = jax.nn.sigmoid(g[:, 0 * H2:1 * H2])    # [i_f | i_b]
        f_g = jax.nn.sigmoid(g[:, 1 * H2:2 * H2])    # [f_f | f_b]
        g_g = jnp.tanh(g[:, 2 * H2:3 * H2])          # [g_f | g_b]
        o_g = jax.nn.sigmoid(g[:, 3 * H2:4 * H2])    # [o_f | o_b]
        c = f_g * c + i_g * g_g
        h = o_g * jnp.tanh(c)                        # [h_fwd | h_bwd]

    # hidden = dropout(cat(h_fwd, h_bwd)) -> identity in eval; the lane layout already IS the
    # concatenation, so the FC consumes h directly (no concat, no split of fc_w).
    out_ref[...] = (jnp.dot(h, fcw_ref[...], preferred_element_type=jnp.float32)
                    + fcb_ref[...])


def _interleave_gate_cols(w_f, w_b, H):
    """Map per-direction gate columns [i f g o] (4H each) to the packed lane layout
    [i_f i_b f_f f_b g_f g_b o_f o_b] (8H)."""
    parts = []
    for k in range(4):
        parts.append(w_f[..., k * H:(k + 1) * H])
        parts.append(w_b[..., k * H:(k + 1) * H])
    return jnp.concatenate(parts, axis=-1)


def pack_params(raw):
    """One-time weight packing (outside the per-call hot path)."""
    H = raw["whh_f"].shape[0]
    zf = jnp.zeros_like(raw["wih_f"])
    zh = jnp.zeros_like(raw["whh_f"])

    wih_f_sp = _interleave_gate_cols(raw["wih_f"], zf, H)            # (E, 8H) bwd cols zero
    wih_b_sp = _interleave_gate_cols(zf, raw["wih_b"], H)            # (E, 8H) fwd cols zero
    bias = _interleave_gate_cols(raw["b_f"], raw["b_b"], H)          # (1, 8H)

    emb = raw["embedding"]
    # Token -> gate pre-activation tables.  Each one-hot row picks exactly one table row, so
    # folding the full (fwd+bwd) bias into the forward table adds the bias exactly once/step.
    exf = jnp.dot(emb, wih_f_sp) + bias                              # (V, 8H)
    exb = jnp.dot(emb, wih_b_sp)                                     # (V, 8H)

    whh = jnp.concatenate(
        [_interleave_gate_cols(raw["whh_f"], zh, H),
         _interleave_gate_cols(zh, raw["whh_b"], H)], axis=0)        # (2H, 8H) block-diagonal

    return {
        "exf": exf,
        "exb": exb,
        "whh": whh,
        "fc_w": raw["fc_w"],                                         # (2H, O)
        "fc_b": raw["fc_b"],                                         # (1, O)
    }


@jax.jit
def lstm_classifier_forward(text, packed):
    """text: (B, T) int32 token ids -> logits (B, output_dim) float32."""
    B, T = text.shape
    out_dim = packed["fc_b"].shape[-1]

    # Only a tiny integer reshuffle here (a few dozen bytes); the embedding gather itself
    # happens inside the kernel, so no (B,T,E) float intermediate ever touches HBM.
    ids = text.T.reshape(T * B, 1).astype(jnp.int32)    # forward order, time-major

    vmem = pl.BlockSpec(memory_space=pltpu.MemorySpace.VMEM)
    return pl.pallas_call(
        lstm_classifier_kernel,
        out_shape=jax.ShapeDtypeStruct((B, out_dim), jnp.float32),
        in_specs=[vmem] * 6,
        out_specs=vmem,
    )(ids, packed["exf"], packed["exb"], packed["whh"], packed["fc_w"], packed["fc_b"])


def lstm_classifier_reference(text, raw):
    """Pure-JAX forward (matches the PyTorch module in eval mode), from the raw params."""
    emb = jnp.take(raw["embedding"], text, axis=0)       # (B, T, E)
    B, T, _ = emb.shape
    H = raw["whh_f"].shape[0]
    x = jnp.transpose(emb, (1, 0, 2))                    # (T, B, E)

    def run(seq, wih, whh, b):
        h = jnp.zeros((B, H), jnp.float32)
        c = jnp.zeros((B, H), jnp.float32)
        for t in range(T):
            gates = seq[t] @ wih + h @ whh + b
            i = jax.nn.sigmoid(gates[:, 0 * H:1 * H])
            f = jax.nn.sigmoid(gates[:, 1 * H:2 * H])
            g = jnp.tanh(gates[:, 2 * H:3 * H])
            o = jax.nn.sigmoid(gates[:, 3 * H:4 * H])
            c = f * c + i * g
            h = o * jnp.tanh(c)
        return h

    h_f = run(x, raw["wih_f"], raw["whh_f"], raw["b_f"])
    h_b = run(x[::-1], raw["wih_b"], raw["whh_b"], raw["b_b"])
    hidden = jnp.concatenate([h_f, h_b], axis=1)
    return hidden @ raw["fc_w"] + raw["fc_b"]


def init_params(key, vocab_size, embedding_dim, hidden_dim, output_dim):
    ks = jax.random.split(key, 9)
    s = 0.1
    H4 = 4 * hidden_dim
    return {
        "embedding": s * jax.random.normal(ks[0], (vocab_size, embedding_dim), jnp.float32),
        # forward direction (already (in, out)-transposed; b = b_ih + b_hh combined)
        "wih_f": s * jax.random.normal(ks[1], (embedding_dim, H4), jnp.float32),
        "whh_f": s * jax.random.normal(ks[2], (hidden_dim, H4), jnp.float32),
        "b_f": s * jax.random.normal(ks[3], (1, H4), jnp.float32),
        # backward direction
        "wih_b": s * jax.random.normal(ks[4], (embedding_dim, H4), jnp.float32),
        "whh_b": s * jax.random.normal(ks[5], (hidden_dim, H4), jnp.float32),
        "b_b": s * jax.random.normal(ks[6], (1, H4), jnp.float32),
        # final linear: in = 2*hidden_dim (bidirectional concat)
        "fc_w": s * jax.random.normal(ks[7], (2 * hidden_dim, output_dim), jnp.float32),
        "fc_b": s * jax.random.normal(ks[8], (1, output_dim), jnp.float32),
    }


if __name__ == "__main__":
    vocab_size = 50
    embedding_dim = 16
    hidden_dim = 32
    output_dim = 4
    batch = 2
    seq_len = 8

    key = jax.random.PRNGKey(0)
    k_params, k_text = jax.random.split(key)
    raw = init_params(k_params, vocab_size, embedding_dim, hidden_dim, output_dim)
    packed = pack_params(raw)   # done once, outside the hot path
    text = jax.random.randint(k_text, (batch, seq_len), 0, vocab_size, dtype=jnp.int32)

    logits = lstm_classifier_forward(text, packed)
    jax.block_until_ready(logits)
    assert logits.shape == (batch, output_dim)
    assert logits.dtype == jnp.float32

    ref = lstm_classifier_reference(text, raw)
    np.testing.assert_allclose(np.asarray(logits), np.asarray(ref), rtol=5e-2, atol=5e-3)
    print("KERNEL_OK")
</pallas_src>

<mosaic_0001>
module attributes {stable_mosaic.version = 11 : i64} {
  func.func @lstm_classifier_kernel(%arg0: memref<16x1xi32, #tpu.memory_space<vmem>>, %arg1: memref<50x256xf32, #tpu.memory_space<vmem>>, %arg2: memref<50x256xf32, #tpu.memory_space<vmem>>, %arg3: memref<64x256xf32, #tpu.memory_space<vmem>>, %arg4: memref<64x4xf32, #tpu.memory_space<vmem>>, %arg5: memref<1x4xf32, #tpu.memory_space<vmem>>, %arg6: memref<2x4xf32, #tpu.memory_space<vmem>>) attributes {dimension_semantics = [], scalar_prefetch = 0 : i64, scratch_operands = 0 : i64, tpu.core_type = #tpu.core_type<tc>} {
    %0 = tpu.iota {dimensions = array<i32: 1>} : vector<16x50xi32>
    %c0 = arith.constant 0 : index
    %c0_0 = arith.constant 0 : index
    %1 = vector.load %arg0[%c0, %c0_0] : memref<16x1xi32, #tpu.memory_space<vmem>>, vector<16x1xi32>
    %2 = vector.broadcast %1 : vector<16x1xi32> to vector<16x50xi32>
    %3 = arith.cmpi eq, %2, %0 : vector<16x50xi32>
    %4 = arith.extui %3 : vector<16x50xi1> to vector<16x50xi32>
    %5 = arith.sitofp %4 : vector<16x50xi32> to vector<16x50xf32>
    %c0_1 = arith.constant 0 : index
    %c0_2 = arith.constant 0 : index
    %6 = vector.load %arg1[%c0_1, %c0_2] : memref<50x256xf32, #tpu.memory_space<vmem>>, vector<50x256xf32>
    %cst = arith.constant dense<0.000000e+00> : vector<16x256xf32>
    %7 = tpu.matmul %5, %6, %cst {dimension_numbers = #tpu.dot_dimension_numbers<[1], [0], [0], [1], [0, 0, 1, 1], [], []>} : vector<16x50xf32>, vector<50x256xf32>, vector<16x256xf32> -> vector<16x256xf32>
    %c0_3 = arith.constant 0 : index
    %c0_4 = arith.constant 0 : index
    %8 = vector.load %arg2[%c0_3, %c0_4] : memref<50x256xf32, #tpu.memory_space<vmem>>, vector<50x256xf32>
    %cst_5 = arith.constant dense<0.000000e+00> : vector<16x256xf32>
    %9 = tpu.matmul %5, %8, %cst_5 {dimension_numbers = #tpu.dot_dimension_numbers<[1], [0], [0], [1], [0, 0, 1, 1], [], []>} : vector<16x50xf32>, vector<50x256xf32>, vector<16x256xf32> -> vector<16x256xf32>
    %c0_6 = arith.constant 0 : index
    %c0_7 = arith.constant 0 : index
    %10 = vector.load %arg3[%c0_6, %c0_7] : memref<64x256xf32, #tpu.memory_space<vmem>>, vector<64x256xf32>
    %cst_8 = arith.constant 0.000000e+00 : f32
    %11 = vector.broadcast %cst_8 : f32 to vector<2x64xf32>
    %cst_9 = arith.constant 0.000000e+00 : f32
    %12 = vector.broadcast %cst_9 : f32 to vector<2x64xf32>
    %13 = vector.extract_strided_slice %7 {offsets = [0, 0], sizes = [2, 256], strides = [1, 1]} : vector<16x256xf32> to vector<2x256xf32>
    %14 = vector.extract_strided_slice %9 {offsets = [14, 0], sizes = [2, 256], strides = [1, 1]} : vector<16x256xf32> to vector<2x256xf32>
    %15 = arith.addf %13, %14 : vector<2x256xf32>
    %cst_10 = arith.constant dense<0.000000e+00> : vector<2x256xf32>
    %16 = tpu.matmul %11, %10, %cst_10 {dimension_numbers = #tpu.dot_dimension_numbers<[1], [0], [0], [1], [0, 0, 1, 1], [], []>} : vector<2x64xf32>, vector<64x256xf32>, vector<2x256xf32> -> vector<2x256xf32>
    %17 = arith.addf %15, %16 : vector<2x256xf32>
    %18 = vector.extract_strided_slice %17 {offsets = [0, 0], sizes = [2, 64], strides = [1, 1]} : vector<2x256xf32> to vector<2x64xf32>
    %19 = arith.negf %18 : vector<2x64xf32>
    %20 = math.exp %19 : vector<2x64xf32>
    %cst_11 = arith.constant 1.000000e+00 : f32
    %21 = vector.broadcast %cst_11 : f32 to vector<2x64xf32>
    %22 = arith.addf %21, %20 : vector<2x64xf32>
    %23 = arith.divf %21, %22 : vector<2x64xf32>
    %24 = vector.extract_strided_slice %17 {offsets = [0, 64], sizes = [2, 64], strides = [1, 1]} : vector<2x256xf32> to vector<2x64xf32>
    %25 = arith.negf %24 : vector<2x64xf32>
    %26 = math.exp %25 : vector<2x64xf32>
    %cst_12 = arith.constant 1.000000e+00 : f32
    %27 = vector.broadcast %cst_12 : f32 to vector<2x64xf32>
    %28 = arith.addf %27, %26 : vector<2x64xf32>
    %29 = arith.divf %27, %28 : vector<2x64xf32>
    %30 = vector.extract_strided_slice %17 {offsets = [0, 128], sizes = [2, 64], strides = [1, 1]} : vector<2x256xf32> to vector<2x64xf32>
    %31 = math.tanh %30 : vector<2x64xf32>
    %32 = vector.extract_strided_slice %17 {offsets = [0, 192], sizes = [2, 64], strides = [1, 1]} : vector<2x256xf32> to vector<2x64xf32>
    %33 = arith.negf %32 : vector<2x64xf32>
    %34 = math.exp %33 : vector<2x64xf32>
    %cst_13 = arith.constant 1.000000e+00 : f32
    %35 = vector.broadcast %cst_13 : f32 to vector<2x64xf32>
    %36 = arith.addf %35, %34 : vector<2x64xf32>
    %37 = arith.divf %35, %36 : vector<2x64xf32>
    %38 = arith.mulf %29, %12 : vector<2x64xf32>
    %39 = arith.mulf %23, %31 : vector<2x64xf32>
    %40 = arith.addf %38, %39 : vector<2x64xf32>
    %41 = math.tanh %40 : vector<2x64xf32>
    %42 = arith.mulf %37, %41 : vector<2x64xf32>
    %43 = vector.extract_strided_slice %7 {offsets = [2, 0], sizes = [2, 256], strides = [1, 1]} : vector<16x256xf32> to vector<2x256xf32>
    %44 = vector.extract_strided_slice %9 {offsets = [12, 0], sizes = [2, 256], strides = [1, 1]} : vector<16x256xf32> to vector<2x256xf32>
    %45 = arith.addf %43, %44 : vector<2x256xf32>
    %cst_14 = arith.constant dense<0.000000e+00> : vector<2x256xf32>
    %46 = tpu.matmul %42, %10, %cst_14 {dimension_numbers = #tpu.dot_dimension_numbers<[1], [0], [0], [1], [0, 0, 1, 1], [], []>} : vector<2x64xf32>, vector<64x256xf32>, vector<2x256xf32> -> vector<2x256xf32>
    %47 = arith.addf %45, %46 : vector<2x256xf32>
    %48 = vector.extract_strided_slice %47 {offsets = [0, 0], sizes = [2, 64], strides = [1, 1]} : vector<2x256xf32> to vector<2x64xf32>
    %49 = arith.negf %48 : vector<2x64xf32>
    %50 = math.exp %49 : vector<2x64xf32>
    %cst_15 = arith.constant 1.000000e+00 : f32
    %51 = vector.broadcast %cst_15 : f32 to vector<2x64xf32>
    %52 = arith.addf %51, %50 : vector<2x64xf32>
    %53 = arith.divf %51, %52 : vector<2x64xf32>
    %54 = vector.extract_strided_slice %47 {offsets = [0, 64], sizes = [2, 64], strides = [1, 1]} : vector<2x256xf32> to vector<2x64xf32>
    %55 = arith.negf %54 : vector<2x64xf32>
    %56 = math.exp %55 : vector<2x64xf32>
    %cst_16 = arith.constant 1.000000e+00 : f32
    %57 = vector.broadcast %cst_16 : f32 to vector<2x64xf32>
    %58 = arith.addf %57, %56 : vector<2x64xf32>
    %59 = arith.divf %57, %58 : vector<2x64xf32>
    %60 = vector.extract_strided_slice %47 {offsets = [0, 128], sizes = [2, 64], strides = [1, 1]} : vector<2x256xf32> to vector<2x64xf32>
    %61 = math.tanh %60 : vector<2x64xf32>
    %62 = vector.extract_strided_slice %47 {offsets = [0, 192], sizes = [2, 64], strides = [1, 1]} : vector<2x256xf32> to vector<2x64xf32>
    %63 = arith.negf %62 : vector<2x64xf32>
    %64 = math.exp %63 : vector<2x64xf32>
    %cst_17 = arith.constant 1.000000e+00 : f32
    %65 = vector.broadcast %cst_17 : f32 to vector<2x64xf32>
    %66 = arith.addf %65, %64 : vector<2x64xf32>
    %67 = arith.divf %65, %66 : vector<2x64xf32>
    %68 = arith.mulf %59, %40 : vector<2x64xf32>
    %69 = arith.mulf %53, %61 : vector<2x64xf32>
    %70 = arith.addf %68, %69 : vector<2x64xf32>
    %71 = math.tanh %70 : vector<2x64xf32>
    %72 = arith.mulf %67, %71 : vector<2x64xf32>
    %73 = vector.extract_strided_slice %7 {offsets = [4, 0], sizes = [2, 256], strides = [1, 1]} : vector<16x256xf32> to vector<2x256xf32>
    %74 = vector.extract_strided_slice %9 {offsets = [10, 0], sizes = [2, 256], strides = [1, 1]} : vector<16x256xf32> to vector<2x256xf32>
    %75 = arith.addf %73, %74 : vector<2x256xf32>
    %cst_18 = arith.constant dense<0.000000e+00> : vector<2x256xf32>
    %76 = tpu.matmul %72, %10, %cst_18 {dimension_numbers = #tpu.dot_dimension_numbers<[1], [0], [0], [1], [0, 0, 1, 1], [], []>} : vector<2x64xf32>, vector<64x256xf32>, vector<2x256xf32> -> vector<2x256xf32>
    %77 = arith.addf %75, %76 : vector<2x256xf32>
    %78 = vector.extract_strided_slice %77 {offsets = [0, 0], sizes = [2, 64], strides = [1, 1]} : vector<2x256xf32> to vector<2x64xf32>
    %79 = arith.negf %78 : vector<2x64xf32>
    %80 = math.exp %79 : vector<2x64xf32>
    %cst_19 = arith.constant 1.000000e+00 : f32
    %81 = vector.broadcast %cst_19 : f32 to vector<2x64xf32>
    %82 = arith.addf %81, %80 : vector<2x64xf32>
    %83 = arith.divf %81, %82 : vector<2x64xf32>
    %84 = vector.extract_strided_slice %77 {offsets = [0, 64], sizes = [2, 64], strides = [1, 1]} : vector<2x256xf32> to vector<2x64xf32>
    %85 = arith.negf %84 : vector<2x64xf32>
    %86 = math.exp %85 : vector<2x64xf32>
    %cst_20 = arith.constant 1.000000e+00 : f32
    %87 = vector.broadcast %cst_20 : f32 to vector<2x64xf32>
    %88 = arith.addf %87, %86 : vector<2x64xf32>
    %89 = arith.divf %87, %88 : vector<2x64xf32>
    %90 = vector.extract_strided_slice %77 {offsets = [0, 128], sizes = [2, 64], strides = [1, 1]} : vector<2x256xf32> to vector<2x64xf32>
    %91 = math.tanh %90 : vector<2x64xf32>
    %92 = vector.extract_strided_slice %77 {offsets = [0, 192], sizes = [2, 64], strides = [1, 1]} : vector<2x256xf32> to vector<2x64xf32>
    %93 = arith.negf %92 : vector<2x64xf32>
    %94 = math.exp %93 : vector<2x64xf32>
    %cst_21 = arith.constant 1.000000e+00 : f32
    %95 = vector.broadcast %cst_21 : f32 to vector<2x64xf32>
    %96 = arith.addf %95, %94 : vector<2x64xf32>
    %97 = arith.divf %95, %96 : vector<2x64xf32>
    %98 = arith.mulf %89, %70 : vector<2x64xf32>
    %99 = arith.mulf %83, %91 : vector<2x64xf32>
    %100 = arith.addf %98, %99 : vector<2x64xf32>
    %101 = math.tanh %100 : vector<2x64xf32>
    %102 = arith.mulf %97, %101 : vector<2x64xf32>
    %103 = vector.extract_strided_slice %7 {offsets = [6, 0], sizes = [2, 256], strides = [1, 1]} : vector<16x256xf32> to vector<2x256xf32>
    %104 = vector.extract_strided_slice %9 {offsets = [8, 0], sizes = [2, 256], strides = [1, 1]} : vector<16x256xf32> to vector<2x256xf32>
    %105 = arith.addf %103, %104 : vector<2x256xf32>
    %cst_22 = arith.constant dense<0.000000e+00> : vector<2x256xf32>
    %106 = tpu.matmul %102, %10, %cst_22 {dimension_numbers = #tpu.dot_dimension_numbers<[1], [0], [0], [1], [0, 0, 1, 1], [], []>} : vector<2x64xf32>, vector<64x256xf32>, vector<2x256xf32> -> vector<2x256xf32>
    %107 = arith.addf %105, %106 : vector<2x256xf32>
    %108 = vector.extract_strided_slice %107 {offsets = [0, 0], sizes = [2, 64], strides = [1, 1]} : vector<2x256xf32> to vector<2x64xf32>
    %109 = arith.negf %108 : vector<2x64xf32>
    %110 = math.exp %109 : vector<2x64xf32>
    %cst_23 = arith.constant 1.000000e+00 : f32
    %111 = vector.broadcast %cst_23 : f32 to vector<2x64xf32>
    %112 = arith.addf %111, %110 : vector<2x64xf32>
    %113 = arith.divf %111, %112 : vector<2x64xf32>
    %114 = vector.extract_strided_slice %107 {offsets = [0, 64], sizes = [2, 64], strides = [1, 1]} : vector<2x256xf32> to vector<2x64xf32>
    %115 = arith.negf %114 : vector<2x64xf32>
    %116 = math.exp %115 : vector<2x64xf32>
    %cst_24 = arith.constant 1.000000e+00 : f32
    %117 = vector.broadcast %cst_24 : f32 to vector<2x64xf32>
    %118 = arith.addf %117, %116 : vector<2x64xf32>
    %119 = arith.divf %117, %118 : vector<2x64xf32>
    %120 = vector.extract_strided_slice %107 {offsets = [0, 128], sizes = [2, 64], strides = [1, 1]} : vector<2x256xf32> to vector<2x64xf32>
    %121 = math.tanh %120 : vector<2x64xf32>
    %122 = vector.extract_strided_slice %107 {offsets = [0, 192], sizes = [2, 64], strides = [1, 1]} : vector<2x256xf32> to vector<2x64xf32>
    %123 = arith.negf %122 : vector<2x64xf32>
    %124 = math.exp %123 : vector<2x64xf32>
    %cst_25 = arith.constant 1.000000e+00 : f32
    %125 = vector.broadcast %cst_25 : f32 to vector<2x64xf32>
    %126 = arith.addf %125, %124 : vector<2x64xf32>
    %127 = arith.divf %125, %126 : vector<2x64xf32>
    %128 = arith.mulf %119, %100 : vector<2x64xf32>
    %129 = arith.mulf %113, %121 : vector<2x64xf32>
    %130 = arith.addf %128, %129 : vector<2x64xf32>
    %131 = math.tanh %130 : vector<2x64xf32>
    %132 = arith.mulf %127, %131 : vector<2x64xf32>
    %133 = vector.extract_strided_slice %7 {offsets = [8, 0], sizes = [2, 256], strides = [1, 1]} : vector<16x256xf32> to vector<2x256xf32>
    %134 = vector.extract_strided_slice %9 {offsets = [6, 0], sizes = [2, 256], strides = [1, 1]} : vector<16x256xf32> to vector<2x256xf32>
    %135 = arith.addf %133, %134 : vector<2x256xf32>
    %cst_26 = arith.constant dense<0.000000e+00> : vector<2x256xf32>
    %136 = tpu.matmul %132, %10, %cst_26 {dimension_numbers = #tpu.dot_dimension_numbers<[1], [0], [0], [1], [0, 0, 1, 1], [], []>} : vector<2x64xf32>, vector<64x256xf32>, vector<2x256xf32> -> vector<2x256xf32>
    %137 = arith.addf %135, %136 : vector<2x256xf32>
    %138 = vector.extract_strided_slice %137 {offsets = [0, 0], sizes = [2, 64], strides = [1, 1]} : vector<2x256xf32> to vector<2x64xf32>
    %139 = arith.negf %138 : vector<2x64xf32>
    %140 = math.exp %139 : vector<2x64xf32>
    %cst_27 = arith.constant 1.000000e+00 : f32
    %141 = vector.broadcast %cst_27 : f32 to vector<2x64xf32>
    %142 = arith.addf %141, %140 : vector<2x64xf32>
    %143 = arith.divf %141, %142 : vector<2x64xf32>
    %144 = vector.extract_strided_slice %137 {offsets = [0, 64], sizes = [2, 64], strides = [1, 1]} : vector<2x256xf32> to vector<2x64xf32>
    %145 = arith.negf %144 : vector<2x64xf32>
    %146 = math.exp %145 : vector<2x64xf32>
    %cst_28 = arith.constant 1.000000e+00 : f32
    %147 = vector.broadcast %cst_28 : f32 to vector<2x64xf32>
    %148 = arith.addf %147, %146 : vector<2x64xf32>
    %149 = arith.divf %147, %148 : vector<2x64xf32>
    %150 = vector.extract_strided_slice %137 {offsets = [0, 128], sizes = [2, 64], strides = [1, 1]} : vector<2x256xf32> to vector<2x64xf32>
    %151 = math.tanh %150 : vector<2x64xf32>
    %152 = vector.extract_strided_slice %137 {offsets = [0, 192], sizes = [2, 64], strides = [1, 1]} : vector<2x256xf32> to vector<2x64xf32>
    %153 = arith.negf %152 : vector<2x64xf32>
    %154 = math.exp %153 : vector<2x64xf32>
    %cst_29 = arith.constant 1.000000e+00 : f32
    %155 = vector.broadcast %cst_29 : f32 to vector<2x64xf32>
    %156 = arith.addf %155, %154 : vector<2x64xf32>
    %157 = arith.divf %155, %156 : vector<2x64xf32>
    %158 = arith.mulf %149, %130 : vector<2x64xf32>
    %159 = arith.mulf %143, %151 : vector<2x64xf32>
    %160 = arith.addf %158, %159 : vector<2x64xf32>
    %161 = math.tanh %160 : vector<2x64xf32>
    %162 = arith.mulf %157, %161 : vector<2x64xf32>
    %163 = vector.extract_strided_slice %7 {offsets = [10, 0], sizes = [2, 256], strides = [1, 1]} : vector<16x256xf32> to vector<2x256xf32>
    %164 = vector.extract_strided_slice %9 {offsets = [4, 0], sizes = [2, 256], strides = [1, 1]} : vector<16x256xf32> to vector<2x256xf32>
    %165 = arith.addf %163, %164 : vector<2x256xf32>
    %cst_30 = arith.constant dense<0.000000e+00> : vector<2x256xf32>
    %166 = tpu.matmul %162, %10, %cst_30 {dimension_numbers = #tpu.dot_dimension_numbers<[1], [0], [0], [1], [0, 0, 1, 1], [], []>} : vector<2x64xf32>, vector<64x256xf32>, vector<2x256xf32> -> vector<2x256xf32>
    %167 = arith.addf %165, %166 : vector<2x256xf32>
    %168 = vector.extract_strided_slice %167 {offsets = [0, 0], sizes = [2, 64], strides = [1, 1]} : vector<2x256xf32> to vector<2x64xf32>
    %169 = arith.negf %168 : vector<2x64xf32>
    %170 = math.exp %169 : vector<2x64xf32>
    %cst_31 = arith.constant 1.000000e+00 : f32
    %171 = vector.broadcast %cst_31 : f32 to vector<2x64xf32>
    %172 = arith.addf %171, %170 : vector<2x64xf32>
    %173 = arith.divf %171, %172 : vector<2x64xf32>
    %174 = vector.extract_strided_slice %167 {offsets = [0, 64], sizes = [2, 64], strides = [1, 1]} : vector<2x256xf32> to vector<2x64xf32>
    %175 = arith.negf %174 : vector<2x64xf32>
    %176 = math.exp %175 : vector<2x64xf32>
    %cst_32 = arith.constant 1.000000e+00 : f32
    %177 = vector.broadcast %cst_32 : f32 to vector<2x64xf32>
    %178 = arith.addf %177, %176 : vector<2x64xf32>
    %179 = arith.divf %177, %178 : vector<2x64xf32>
    %180 = vector.extract_strided_slice %167 {offsets = [0, 128], sizes = [2, 64], strides = [1, 1]} : vector<2x256xf32> to vector<2x64xf32>
    %181 = math.tanh %180 : vector<2x64xf32>
    %182 = vector.extract_strided_slice %167 {offsets = [0, 192], sizes = [2, 64], strides = [1, 1]} : vector<2x256xf32> to vector<2x64xf32>
    %183 = arith.negf %182 : vector<2x64xf32>
    %184 = math.exp %183 : vector<2x64xf32>
    %cst_33 = arith.constant 1.000000e+00 : f32
    %185 = vector.broadcast %cst_33 : f32 to vector<2x64xf32>
    %186 = arith.addf %185, %184 : vector<2x64xf32>
    %187 = arith.divf %185, %186 : vector<2x64xf32>
    %188 = arith.mulf %179, %160 : vector<2x64xf32>
    %189 = arith.mulf %173, %181 : vector<2x64xf32>
    %190 = arith.addf %188, %189 : vector<2x64xf32>
    %191 = math.tanh %190 : vector<2x64xf32>
    %192 = arith.mulf %187, %191 : vector<2x64xf32>
    %193 = vector.extract_strided_slice %7 {offsets = [12, 0], sizes = [2, 256], strides = [1, 1]} : vector<16x256xf32> to vector<2x256xf32>
    %194 = vector.extract_strided_slice %9 {offsets = [2, 0], sizes = [2, 256], strides = [1, 1]} : vector<16x256xf32> to vector<2x256xf32>
    %195 = arith.addf %193, %194 : vector<2x256xf32>
    %cst_34 = arith.constant dense<0.000000e+00> : vector<2x256xf32>
    %196 = tpu.matmul %192, %10, %cst_34 {dimension_numbers = #tpu.dot_dimension_numbers<[1], [0], [0], [1], [0, 0, 1, 1], [], []>} : vector<2x64xf32>, vector<64x256xf32>, vector<2x256xf32> -> vector<2x256xf32>
    %197 = arith.addf %195, %196 : vector<2x256xf32>
    %198 = vector.extract_strided_slice %197 {offsets = [0, 0], sizes = [2, 64], strides = [1, 1]} : vector<2x256xf32> to vector<2x64xf32>
    %199 = arith.negf %198 : vector<2x64xf32>
    %200 = math.exp %199 : vector<2x64xf32>
    %cst_35 = arith.constant 1.000000e+00 : f32
    %201 = vector.broadcast %cst_35 : f32 to vector<2x64xf32>
    %202 = arith.addf %201, %200 : vector<2x64xf32>
    %203 = arith.divf %201, %202 : vector<2x64xf32>
    %204 = vector.extract_strided_slice %197 {offsets = [0, 64], sizes = [2, 64], strides = [1, 1]} : vector<2x256xf32> to vector<2x64xf32>
    %205 = arith.negf %204 : vector<2x64xf32>
    %206 = math.exp %205 : vector<2x64xf32>
    %cst_36 = arith.constant 1.000000e+00 : f32
    %207 = vector.broadcast %cst_36 : f32 to vector<2x64xf32>
    %208 = arith.addf %207, %206 : vector<2x64xf32>
    %209 = arith.divf %207, %208 : vector<2x64xf32>
    %210 = vector.extract_strided_slice %197 {offsets = [0, 128], sizes = [2, 64], strides = [1, 1]} : vector<2x256xf32> to vector<2x64xf32>
    %211 = math.tanh %210 : vector<2x64xf32>
    %212 = vector.extract_strided_slice %197 {offsets = [0, 192], sizes = [2, 64], strides = [1, 1]} : vector<2x256xf32> to vector<2x64xf32>
    %213 = arith.negf %212 : vector<2x64xf32>
    %214 = math.exp %213 : vector<2x64xf32>
    %cst_37 = arith.constant 1.000000e+00 : f32
    %215 = vector.broadcast %cst_37 : f32 to vector<2x64xf32>
    %216 = arith.addf %215, %214 : vector<2x64xf32>
    %217 = arith.divf %215, %216 : vector<2x64xf32>
    %218 = arith.mulf %209, %190 : vector<2x64xf32>
    %219 = arith.mulf %203, %211 : vector<2x64xf32>
    %220 = arith.addf %218, %219 : vector<2x64xf32>
    %221 = math.tanh %220 : vector<2x64xf32>
    %222 = arith.mulf %217, %221 : vector<2x64xf32>
    %223 = vector.extract_strided_slice %7 {offsets = [14, 0], sizes = [2, 256], strides = [1, 1]} : vector<16x256xf32> to vector<2x256xf32>
    %224 = vector.extract_strided_slice %9 {offsets = [0, 0], sizes = [2, 256], strides = [1, 1]} : vector<16x256xf32> to vector<2x256xf32>
    %225 = arith.addf %223, %224 : vector<2x256xf32>
    %cst_38 = arith.constant dense<0.000000e+00> : vector<2x256xf32>
    %226 = tpu.matmul %222, %10, %cst_38 {dimension_numbers = #tpu.dot_dimension_numbers<[1], [0], [0], [1], [0, 0, 1, 1], [], []>} : vector<2x64xf32>, vector<64x256xf32>, vector<2x256xf32> -> vector<2x256xf32>
    %227 = arith.addf %225, %226 : vector<2x256xf32>
    %228 = vector.extract_strided_slice %227 {offsets = [0, 0], sizes = [2, 64], strides = [1, 1]} : vector<2x256xf32> to vector<2x64xf32>
    %229 = arith.negf %228 : vector<2x64xf32>
    %230 = math.exp %229 : vector<2x64xf32>
    %cst_39 = arith.constant 1.000000e+00 : f32
    %231 = vector.broadcast %cst_39 : f32 to vector<2x64xf32>
    %232 = arith.addf %231, %230 : vector<2x64xf32>
    %233 = arith.divf %231, %232 : vector<2x64xf32>
    %234 = vector.extract_strided_slice %227 {offsets = [0, 64], sizes = [2, 64], strides = [1, 1]} : vector<2x256xf32> to vector<2x64xf32>
    %235 = arith.negf %234 : vector<2x64xf32>
    %236 = math.exp %235 : vector<2x64xf32>
    %cst_40 = arith.constant 1.000000e+00 : f32
    %237 = vector.broadcast %cst_40 : f32 to vector<2x64xf32>
    %238 = arith.addf %237, %236 : vector<2x64xf32>
    %239 = arith.divf %237, %238 : vector<2x64xf32>
    %240 = vector.extract_strided_slice %227 {offsets = [0, 128], sizes = [2, 64], strides = [1, 1]} : vector<2x256xf32> to vector<2x64xf32>
    %241 = math.tanh %240 : vector<2x64xf32>
    %242 = vector.extract_strided_slice %227 {offsets = [0, 192], sizes = [2, 64], strides = [1, 1]} : vector<2x256xf32> to vector<2x64xf32>
    %243 = arith.negf %242 : vector<2x64xf32>
    %244 = math.exp %243 : vector<2x64xf32>
    %cst_41 = arith.constant 1.000000e+00 : f32
    %245 = vector.broadcast %cst_41 : f32 to vector<2x64xf32>
    %246 = arith.addf %245, %244 : vector<2x64xf32>
    %247 = arith.divf %245, %246 : vector<2x64xf32>
    %248 = arith.mulf %239, %220 : vector<2x64xf32>
    %249 = arith.mulf %233, %241 : vector<2x64xf32>
    %250 = arith.addf %248, %249 : vector<2x64xf32>
    %251 = math.tanh %250 : vector<2x64xf32>
    %252 = arith.mulf %247, %251 : vector<2x64xf32>
    %c0_42 = arith.constant 0 : index
    %c0_43 = arith.constant 0 : index
    %253 = vector.load %arg4[%c0_42, %c0_43] : memref<64x4xf32, #tpu.memory_space<vmem>>, vector<64x4xf32>
    %cst_44 = arith.constant dense<0.000000e+00> : vector<2x4xf32>
    %254 = tpu.matmul %252, %253, %cst_44 {dimension_numbers = #tpu.dot_dimension_numbers<[1], [0], [0], [1], [0, 0, 1, 1], [], []>} : vector<2x64xf32>, vector<64x4xf32>, vector<2x4xf32> -> vector<2x4xf32>
    %c0_45 = arith.constant 0 : index
    %c0_46 = arith.constant 0 : index
    %255 = vector.load %arg5[%c0_45, %c0_46] : memref<1x4xf32, #tpu.memory_space<vmem>>, vector<1x4xf32>
    %256 = vector.broadcast %255 : vector<1x4xf32> to vector<2x4xf32>
    %257 = arith.addf %254, %256 : vector<2x4xf32>
    %c0_47 = arith.constant 0 : index
    %c0_48 = arith.constant 0 : index
    %258 = vector.load %arg6[%c0_47, %c0_48] : memref<2x4xf32, #tpu.memory_space<vmem>>, vector<2x4xf32>
    tpu.vector_store %arg6[%c0_47, %c0_48], %257 {strides = array<i32>} : memref<2x4xf32, #tpu.memory_space<vmem>>, vector<2x4xf32>,
    return
  }
}

</mosaic_0001>

<llo_original>
// kernel: lstm_classifier_forward.1
$region0: #{lstm_classifier_forward.1}
  #allocation0 [shape = 'u32[]', space=smem, size = 0x4, offset = 0x4, fixed_abs, tag = 'smem constant byte address 0x4 - core index']
  #allocation1 [shape = 'u32[144,128]{1,0:T(1,128)}', space=vmem, size = 0x12000, scoped, tag = 'internal scratch']
  %s0 = inlined_call_operand.vmem [shape: s32[16,1], index: 0, kind: input, shape index: {}]
  %s1 = inlined_call_operand.vmem [shape: f32[50,256], index: 1, kind: input, shape index: {}]
  %s2 = inlined_call_operand.hbm [shape: f32[50,256], index: 2, kind: input, shape index: {}]
  %s3 = inlined_call_operand.hbm [shape: f32[64,256], index: 3, kind: input, shape index: {}]
  %s4 = inlined_call_operand.vmem [shape: f32[64,4], index: 4, kind: input, shape index: {}]
  %s5 = inlined_call_operand.vmem [shape: f32[1,4], index: 5, kind: input, shape index: {}]
  %s6 = inlined_call_operand.hbm [shape: f32[2,4], index: 6, kind: output, shape index: {}]
  %s7 = sld [smem:[#allocation0]]
  $region42: #{lstm_classifier_forward.1} parent=0
    _
  %s9 = ssub.s32 1, %s7
  %s10 = scalar_select 0, %s9, %s7
  $region1: #{lstm_classifier_forward.1} parent=0
    #allocation2 [shape = 'u8[57344]{0}', space=vmem, size = 0xe000, scoped, tag = 'input window, operand 2, single buffered']
    #allocation3 [shape = 's32[1]{0}', space=sflag, size = 0x4, scoped, tag = 'scoped memory for lstm_classifier_forward.1']
    #allocation4 [shape = 's32[1]{0}', space=sflag, size = 0x4, scoped, tag = 'scoped memory for lstm_classifier_forward.1']
    #allocation5 [shape = 'u8[65536]{0}', space=vmem, size = 0x10000, scoped, tag = 'input window, operand 3, single buffered']
    #allocation6 [shape = 's32[1]{0}', space=sflag, size = 0x4, scoped, tag = 'scoped memory for lstm_classifier_forward.1']
    #allocation7 [shape = 'u8[1024]{0}', space=vmem, size = 0x400, scoped, tag = 'output window, operand 0, single buffered']
    %11 = vsyncpa [#allocation3], 0
    %12 = vsyncpa [#allocation6], 0
    %13 = vsyncpa [#allocation4], 0
    // Predicated region
    $region2: #{lstm_classifier_forward.1} parent=1 // pred_check
      _
    $region3: #{lstm_classifier_forward.1} parent=1 // pred_check_branch
      %15 = sbr.rel (0) target = $region5
    $region4: #{lstm_classifier_forward.1} parent=1 // pred_region
      _
    $region5: #{lstm_classifier_forward.1} parent=1 // pred_fallthru
      _
    // Predicated region
    $region6: #{lstm_classifier_forward.1} parent=1 // pred_check
      _
    $region7: #{lstm_classifier_forward.1} parent=1 // pred_check_branch
      %17 = sbr.rel (0) target = $region9
    $region8: #{lstm_classifier_forward.1} parent=1 // pred_region
      _
    $region9: #{lstm_classifier_forward.1} parent=1 // pred_fallthru
      _
    // Predicated region
    $region10: #{lstm_classifier_forward.1} parent=1 // pred_check
      _
    $region11: #{lstm_classifier_forward.1} parent=1 // pred_check_branch
      %19 = sbr.rel (0) target = $region13
    $region12: #{lstm_classifier_forward.1} parent=1 // pred_region
      %s21 = ssub.s32 1792, 1792
      %22 = vsyncadd [#allocation3], %s21
      %s23 = sshll.u32 [#allocation2], 4
      %s24 = int_to_ptr.vmem [resolvable:$true] %s23
      %29 = dma.hbm_to_vmem [thread:$0]  %s2, 1792, %s24, [#allocation3], 256, 256, 16
    $region13: #{lstm_classifier_forward.1} parent=1 // pred_fallthru
      _
    // Predicated region
    $region14: #{lstm_classifier_forward.1} parent=1 // pred_check
      _
    $region15: #{lstm_classifier_forward.1} parent=1 // pred_check_branch
      %31 = sbr.rel (0) target = $region17
    $region16: #{lstm_classifier_forward.1} parent=1 // pred_region
      %s33 = ssub.s32 2048, 2048
      %34 = vsyncadd [#allocation6], %s33
      %s35 = sshll.u32 [#allocation5], 4
      %s36 = int_to_ptr.vmem [resolvable:$true] %s35
      %41 = dma.hbm_to_vmem [thread:$0]  %s3, 2048, %s36, [#allocation6], 256, 256, 16
    $region17: #{lstm_classifier_forward.1} parent=1 // pred_fallthru
      _
    // Predicated region
    $region18: #{lstm_classifier_forward.1} parent=1 // pred_check
      _
    $region19: #{lstm_classifier_forward.1} parent=1 // pred_check_branch
      %43 = sbr.rel (0) target = $region21
    $region20: #{lstm_classifier_forward.1} parent=1 // pred_region
      _
    $region21: #{lstm_classifier_forward.1} parent=1 // pred_fallthru
      _
    // Predicated region
    $region22: #{lstm_classifier_forward.1} parent=1 // pred_check
      _
    $region23: #{lstm_classifier_forward.1} parent=1 // pred_check_branch
      %45 = sbr.rel (0) target = $region25
    $region24: #{lstm_classifier_forward.1} parent=1 // pred_region
      _
    $region25: #{lstm_classifier_forward.1} parent=1 // pred_fallthru
      _
    // Predicated region
    $region26: #{lstm_classifier_forward.1} parent=1 // pred_check
      _
    $region27: #{lstm_classifier_forward.1} parent=1 // pred_check_branch
      %47 = sbr.rel (0) target = $region29
    $region28: #{lstm_classifier_forward.1} parent=1 // pred_region
      %48 = dma.done [#allocation3], 1792
    $region29: #{lstm_classifier_forward.1} parent=1 // pred_fallthru
      _
    // Predicated region
    $region30: #{lstm_classifier_forward.1} parent=1 // pred_check
      _
    $region31: #{lstm_classifier_forward.1} parent=1 // pred_check_branch
      %50 = sbr.rel (0) target = $region33
    $region32: #{lstm_classifier_forward.1} parent=1 // pred_region
      %51 = dma.done [#allocation6], 2048
    $region33: #{lstm_classifier_forward.1} parent=1 // pred_fallthru
      _
    %v52 = vlaneseq
    %v53 = vand.u32 %v52, 127
    %v54 = vld [vmem:[%s0] sm:$0xff]
    %v55 = vld [vmem:[%s0 + $0x8] sm:$0xff]
    %56 = vset.pattern.permute.xlu0 0
    %57 = vperm.xlu0 %56, %v54
    %v58 = vpop.permute.xlu0 %57
    %59 = vset.pattern.permute.xlu0 0
    %60 = vperm.xlu0 %59, %v55
    %v61 = vpop.permute.xlu0 %60
    %vm62 = vcmp.eq.s32.totalorder %v58, %v53
    %vm63 = vcmp.eq.s32.totalorder %v61, %v53
    %v64 = vsel %vm62, 1, 0
    %v65 = vsel %vm63, 1, 0
    %v66 = vcvt.s32.f32 %v64
    %v67 = vcvt.s32.f32 %v65
    %v68 = vld [vmem:[%s1] sm:$0xff]
    %v69 = vld [vmem:[%s1 + $0x8] sm:$0xff]
    %v70 = vld [vmem:[%s1 + $0x10] sm:$0xff]
    %v71 = vld [vmem:[%s1 + $0x18] sm:$0xff]
    %v72 = vld [vmem:[%s1 + $0x20] sm:$0xff]
    %v73 = vld [vmem:[%s1 + $0x28] sm:$0xff]
    %v74 = vld [vmem:[%s1 + $0x30] sm:$0xff]
    %v75 = vld [vmem:[%s1 + $0x38] sm:$0xff]
    %v76 = vld [vmem:[%s1 + $0x40] sm:$0xff]
    %v77 = vld [vmem:[%s1 + $0x48] sm:$0xff]
    %v78 = vld [vmem:[%s1 + $0x50] sm:$0xff]
    %v79 = vld [vmem:[%s1 + $0x58] sm:$0xff]
    %v80 = vld [vmem:[%s1 + $0x60] sm:$0x3]
    %v81 = vld [vmem:[%s1 + $0x68] sm:$0x3]
    %vm82 = vcmask 408576
    %v84 = vsel %vm82, %v66, 0
    %v87 = vsel %vm82, %v67, 0
    %vm89 = vcmask 1041408
    %v91 = vsel %vm89, %v80, 0
    %v94 = vsel %vm89, %v81, 0
    %96 = vmatprep.subr.mxu0 %v69
    %97 = vmatpush1.msra.mxu0 %v68
    %98 = vmatprep.subr.mxu0 %v71
    %99 = vmatpush1.msra.mxu0 %v70
    %100 = vmatprep.subr.mxu0 %v73
    %101 = vmatpush1.msra.mxu0 %v72
    %102 = vmatprep.subr.mxu0 %v75
    %103 = vmatpush1.msra.mxu0 %v74
    %104 = vmatprep.subr.mxu0 %v77
    %105 = vmatpush1.msra.mxu0 %v76
    %106 = vmatprep.subr.mxu0 %v79
    %107 = vmatpush1.msra.mxu0 %v78
    %108 = vmatprep.subr.mxu0 %v94
    %109 = vmatpush1.msra.mxu0 %v91
    %110 = vmatprep.subr.mxu0 0.0
    %111 = vmatpush1.msra.mxu0 0.0
    %112 = vmatprep.subr.mxu0 0.0
    %113 = vmatpush1.msra.mxu0 0.0
    %114 = vmatprep.subr.mxu0 0.0
    %115 = vmatpush1.msra.mxu0 0.0
    %116 = vmatprep.subr.mxu0 0.0
    %117 = vmatpush1.msra.mxu0 0.0
    %118 = vmatprep.subr.mxu0 0.0
    %119 = vmatpush1.msra.mxu0 0.0
    %120 = vmatprep.subr.mxu0 0.0
    %121 = vmatpush1.msra.mxu0 0.0
    %122 = vmatprep.subr.mxu0 0.0
    %123 = vmatpush1.msra.mxu0 0.0
    %124 = vmatprep.subr.mxu0 0.0
    %125 = vmatpush1.msra.mxu0 0.0
    %126 = vmatprep.subr.mxu0 0.0
    %127 = vmatpush1.msra.mxu0 0.0
    %128 = vmatprep.subr.mxu0 0.0
    %129 = vmatpush1.msra.mxu0 0.0
    %130 = vmatprep.subr.mxu0 0.0
    %131 = vmatpush1.msra.mxu0 0.0
    %132 = vmatprep.subr.mxu0 0.0
    %133 = vmatpush1.msra.mxu0 0.0
    %134 = vmatprep.subr.mxu0 0.0
    %135 = vmatpush1.msra.mxu0 0.0
    %136 = vmatprep.subr.mxu0 0.0
    %137 = vmatpush1.msra.mxu0 0.0
    %138 = vmatprep.subr.mxu0 0.0
    %139 = vmatpush1.msra.mxu0 0.0
    %140 = vmatprep.subr.mxu0 0.0
    %141 = vmatpush1.msra.mxu0 0.0
    %142 = vmatprep.subr.mxu0 0.0
    %143 = vmatpush1.msra.mxu0 0.0
    %144 = vmatprep.subr.mxu0 0.0
    %145 = vmatpush1.msra.mxu0 0.0
    %146 = vmatprep.subr.mxu0 0.0
    %147 = vmatpush1.msra.mxu0 0.0
    %148 = vmatprep.subr.mxu0 0.0
    %149 = vmatpush1.msra.mxu0 0.0
    %150 = vmatprep.subr.mxu0 0.0
    %151 = vmatpush1.msra.mxu0 0.0
    %152 = vmatprep.subr.mxu0 0.0
    %153 = vmatpush1.msra.mxu0 0.0
    %154 = vmatprep.subr.mxu0 0.0
    %155 = vmatpush1.msra.mxu0 0.0
    %156 = vmatprep.subr.mxu0 0.0
    %157 = vmatpush1.msra.mxu0 0.0
    %158 = vmatprep.subr.mxu0 0.0
    %159 = vmatpush1.msra.mxu0 0.0
    %160 = vmatprep.mubr.f32.mxu0 0.0
    %161 = vmatmul.mubr.f32.gmra.mrb[0].mxu0 %v84
    %v162 = vpop.f32.mrb[0].mxu0
    %v163 = vadd.f32 0.0, %v162
    %v164 = vpop.f32.mrb[0].mxu0
    %v165 = vadd.f32 0.0, %v164
    %166 = vmatprep.mubr.f32.mxu0 0.0
    %167 = vmatmul.mubr.f32.gmra.mrb[0].mxu0 %v87
    %v168 = vpop.f32.mrb[0].mxu0
    %v169 = vadd.f32 0.0, %v168
    %v170 = vpop.f32.mrb[0].mxu0
    %v171 = vadd.f32 0.0, %v170
    %172 = vdwg.mxu0
    %v173 = vld [vmem:[#allocation2] sm:$0xff]
    %v174 = vld [vmem:[#allocation2 + $0x8] sm:$0xff]
    %v175 = vld [vmem:[#allocation2 + $0x10] sm:$0xff]
    %v176 = vld [vmem:[#allocation2 + $0x18] sm:$0xff]
    %v177 = vld [vmem:[#allocation2 + $0x20] sm:$0xff]
    %v178 = vld [vmem:[#allocation2 + $0x28] sm:$0xff]
    %v179 = vld [vmem:[#allocation2 + $0x30] sm:$0xff]
    %v180 = vld [vmem:[#allocation2 + $0x38] sm:$0xff]
    %v181 = vld [vmem:[#allocation2 + $0x40] sm:$0xff]
    %v182 = vld [vmem:[#allocation2 + $0x48] sm:$0xff]
    %v183 = vld [vmem:[#allocation2 + $0x50] sm:$0xff]
    %v184 = vld [vmem:[#allocation2 + $0x58] sm:$0xff]
    %v185 = vld [vmem:[#allocation2 + $0x60] sm:$0x3]
    %v186 = vld [vmem:[#allocation2 + $0x68] sm:$0x3]
    %v188 = vsel %vm89, %v185, 0
    %v191 = vsel %vm89, %v186, 0
    %193 = vmatprep.subr.mxu0 %v174
    %194 = vmatpush1.msra.mxu0 %v173
    %195 = vmatprep.subr.mxu0 %v176
    %196 = vmatpush1.msra.mxu0 %v175
    %197 = vmatprep.subr.mxu0 %v178
    %198 = vmatpush1.msra.mxu0 %v177
    %199 = vmatprep.subr.mxu0 %v180
    %200 = vmatpush1.msra.mxu0 %v179
    %201 = vmatprep.subr.mxu0 %v182
    %202 = vmatpush1.msra.mxu0 %v181
    %203 = vmatprep.subr.mxu0 %v184
    %204 = vmatpush1.msra.mxu0 %v183
    %205 = vmatprep.subr.mxu0 %v191
    %206 = vmatpush1.msra.mxu0 %v188
    %207 = vmatprep.subr.mxu0 0.0
    %208 = vmatpush1.msra.mxu0 0.0
    %209 = vmatprep.subr.mxu0 0.0
    %210 = vmatpush1.msra.mxu0 0.0
    %211 = vmatprep.subr.mxu0 0.0
    %212 = vmatpush1.msra.mxu0 0.0
    %213 = vmatprep.subr.mxu0 0.0
    %214 = vmatpush1.msra.mxu0 0.0
    %215 = vmatprep.subr.mxu0 0.0
    %216 = vmatpush1.msra.mxu0 0.0
    %217 = vmatprep.subr.mxu0 0.0
    %218 = vmatpush1.msra.mxu0 0.0
    %219 = vmatprep.subr.mxu0 0.0
    %220 = vmatpush1.msra.mxu0 0.0
    %221 = vmatprep.subr.mxu0 0.0
    %222 = vmatpush1.msra.mxu0 0.0
    %223 = vmatprep.subr.mxu0 0.0
    %224 = vmatpush1.msra.mxu0 0.0
    %225 = vmatprep.subr.mxu0 0.0
    %226 = vmatpush1.msra.mxu0 0.0
    %227 = vmatprep.subr.mxu0 0.0
    %228 = vmatpush1.msra.mxu0 0.0
    %229 = vmatprep.subr.mxu0 0.0
    %230 = vmatpush1.msra.mxu0 0.0
    %231 = vmatprep.subr.mxu0 0.0
    %232 = vmatpush1.msra.mxu0 0.0
    %233 = vmatprep.subr.mxu0 0.0
    %234 = vmatpush1.msra.mxu0 0.0
    %235 = vmatprep.subr.mxu0 0.0
    %236 = vmatpush1.msra.mxu0 0.0
    %237 = vmatprep.subr.mxu0 0.0
    %238 = vmatpush1.msra.mxu0 0.0
    %239 = vmatprep.subr.mxu0 0.0
    %240 = vmatpush1.msra.mxu0 0.0
    %241 = vmatprep.subr.mxu0 0.0
    %242 = vmatpush1.msra.mxu0 0.0
    %243 = vmatprep.subr.mxu0 0.0
    %244 = vmatpush1.msra.mxu0 0.0
    %245 = vmatprep.subr.mxu0 0.0
    %246 = vmatpush1.msra.mxu0 0.0
    %247 = vmatprep.subr.mxu0 0.0
    %248 = vmatpush1.msra.mxu0 0.0
    %249 = vmatprep.subr.mxu0 0.0
    %250 = vmatpush1.msra.mxu0 0.0
    %251 = vmatprep.subr.mxu0 0.0
    %252 = vmatpush1.msra.mxu0 0.0
    %253 = vmatprep.subr.mxu0 0.0
    %254 = vmatpush1.msra.mxu0 0.0
    %255 = vmatprep.subr.mxu0 0.0
    %256 = vmatpush1.msra.mxu0 0.0
    %257 = vmatprep.mubr.f32.mxu0 0.0
    %258 = vmatmul.mubr.f32.gmra.mrb[0].mxu0 %v84
    %v259 = vpop.f32.mrb[0].mxu0
    %v260 = vadd.f32 0.0, %v259
    %v261 = vpop.f32.mrb[0].mxu0
    %v262 = vadd.f32 0.0, %v261
    %263 = vmatprep.mubr.f32.mxu0 0.0
    %264 = vmatmul.mubr.f32.gmra.mrb[0].mxu0 %v87
    %v265 = vpop.f32.mrb[0].mxu0
    %v266 = vadd.f32 0.0, %v265
    %v267 = vpop.f32.mrb[0].mxu0
    %v268 = vadd.f32 0.0, %v267
    %269 = vdwg.mxu0
    %v270 = vld [vmem:[#allocation5] sm:$0xff]
    %v271 = vld [vmem:[#allocation5 + $0x8] sm:$0xff]
    %v272 = vld [vmem:[#allocation5 + $0x10] sm:$0xff]
    %v273 = vld [vmem:[#allocation5 + $0x18] sm:$0xff]
    %v274 = vld [vmem:[#allocation5 + $0x20] sm:$0xff]
    %v275 = vld [vmem:[#allocation5 + $0x28] sm:$0xff]
    %v276 = vld [vmem:[#allocation5 + $0x30] sm:$0xff]
    %v277 = vld [vmem:[#allocation5 + $0x38] sm:$0xff]
    %v278 = vld [vmem:[#allocation5 + $0x40] sm:$0xff]
    %v279 = vld [vmem:[#allocation5 + $0x48] sm:$0xff]
    %v280 = vld [vmem:[#allocation5 + $0x50] sm:$0xff]
    %v281 = vld [vmem:[#allocation5 + $0x58] sm:$0xff]
    %v282 = vld [vmem:[#allocation5 + $0x60] sm:$0xff]
    %v283 = vld [vmem:[#allocation5 + $0x68] sm:$0xff]
    %v284 = vld [vmem:[#allocation5 + $0x70] sm:$0xff]
    %v285 = vld [vmem:[#allocation5 + $0x78] sm:$0xff]
    %v288 = vrot.slane %v266, 6
    %v289 = vrot.slane %v268, 6
    %v292 = vadd.f32 %v163, %v288
    %v293 = vadd.f32 %v165, %v289
    %vm294 = vcmask 523264
    %v296 = vsel %vm294, 0.0, 0
    %298 = vmatprep.subr.mxu0 %v271
    %299 = vmatpush1.msra.mxu0 %v270
    %300 = vmatprep.subr.mxu0 %v273
    %301 = vmatpush1.msra.mxu0 %v272
    %302 = vmatprep.subr.mxu0 %v275
    %303 = vmatpush1.msra.mxu0 %v274
    %304 = vmatprep.subr.mxu0 %v277
    %305 = vmatpush1.msra.mxu0 %v276
    %306 = vmatprep.subr.mxu0 %v279
    %307 = vmatpush1.msra.mxu0 %v278
    %308 = vmatprep.subr.mxu0 %v281
    %309 = vmatpush1.msra.mxu0 %v280
    %310 = vmatprep.subr.mxu0 %v283
    %311 = vmatpush1.msra.mxu0 %v282
    %312 = vmatprep.subr.mxu0 %v285
    %313 = vmatpush1.msra.mxu0 %v284
    %314 = vmatprep.subr.mxu0 0.0
    %315 = vmatpush1.msra.mxu0 0.0
    %316 = vmatprep.subr.mxu0 0.0
    %317 = vmatpush1.msra.mxu0 0.0
    %318 = vmatprep.subr.mxu0 0.0
    %319 = vmatpush1.msra.mxu0 0.0
    %320 = vmatprep.subr.mxu0 0.0
    %321 = vmatpush1.msra.mxu0 0.0
    %322 = vmatprep.subr.mxu0 0.0
    %323 = vmatpush1.msra.mxu0 0.0
    %324 = vmatprep.subr.mxu0 0.0
    %325 = vmatpush1.msra.mxu0 0.0
    %326 = vmatprep.subr.mxu0 0.0
    %327 = vmatpush1.msra.mxu0 0.0
    %328 = vmatprep.subr.mxu0 0.0
    %329 = vmatpush1.msra.mxu0 0.0
    %330 = vmatprep.subr.mxu0 0.0
    %331 = vmatpush1.msra.mxu0 0.0
    %332 = vmatprep.subr.mxu0 0.0
    %333 = vmatpush1.msra.mxu0 0.0
    %334 = vmatprep.subr.mxu0 0.0
    %335 = vmatpush1.msra.mxu0 0.0
    %336 = vmatprep.subr.mxu0 0.0
    %337 = vmatpush1.msra.mxu0 0.0
    %338 = vmatprep.subr.mxu0 0.0
    %339 = vmatpush1.msra.mxu0 0.0
    %340 = vmatprep.subr.mxu0 0.0
    %341 = vmatpush1.msra.mxu0 0.0
    %342 = vmatprep.subr.mxu0 0.0
    %343 = vmatpush1.msra.mxu0 0.0
    %344 = vmatprep.subr.mxu0 0.0
    %345 = vmatpush1.msra.mxu0 0.0
    %346 = vmatprep.subr.mxu0 0.0
    %347 = vmatpush1.msra.mxu0 0.0
    %348 = vmatprep.subr.mxu0 0.0
    %349 = vmatpush1.msra.mxu0 0.0
    %350 = vmatprep.subr.mxu0 0.0
    %351 = vmatpush1.msra.mxu0 0.0
    %352 = vmatprep.subr.mxu0 0.0
    %353 = vmatpush1.msra.mxu0 0.0
    %354 = vmatprep.subr.mxu0 0.0
    %355 = vmatpush1.msra.mxu0 0.0
    %356 = vmatprep.subr.mxu0 0.0
    %357 = vmatpush1.msra.mxu0 0.0
    %358 = vmatprep.subr.mxu0 0.0
    %359 = vmatpush1.msra.mxu0 0.0
    %360 = vmatprep.subr.mxu0 0.0
    %361 = vmatpush1.msra.mxu0 0.0
    %362 = vmatprep.mubr.f32.mxu0 0.0
    %363 = vmatmul.mubr.f32.gmra.mrb[0].mxu0 %v296
    %v364 = vpop.f32.mrb[0].mxu0
    %v365 = vadd.f32 0.0, %v364
    %v366 = vpop.f32.mrb[0].mxu0
    %v367 = vadd.f32 0.0, %v366
    %368 = vdwg.mxu0
    %v369 = vadd.f32 %v292, %v365
    %v370 = vadd.f32 %v293, %v367
    %v371 = vxor.u32 %v369, 2147483648
    %v372 = vmul.f32 %v371, 1.442695
    %v373 = vpow.pop %v372
    %v374 = vadd.f32 %v373, 1.0
    %v375 = vrcp.pop %v374
    %v376 = vmul.f32 1.0, %v375
    %v377 = vtanh.pop %v370
    %v378 = vxor.u32 %v370, 2147483648
    %v379 = vmul.f32 %v378, 1.442695
    %v380 = vpow.pop %v379
    %v381 = vadd.f32 %v380, 1.0
    %v382 = vrcp.pop %v381
    %v383 = vmul.f32 1.0, %v382
    %v384 = vmul.f32 %v376, 0.0
    %v385 = vmul.f32 %v376, %v377
    %387 = vrot.lane.b32.xlu0 %v385, 64
    %v388 = vpop.permute.xlu0 %387
    %v390 = vadd.f32 %v384, %v388
    %v391 = vtanh.pop %v390
    %v392 = vmul.f32 %v383, %v391
    %v393 = vrot.slane %v266, 2
    %v394 = vrot.slane %v268, 2
    %v397 = vadd.f32 %v163, %v393
    %v398 = vadd.f32 %v165, %v394
    %400 = vrot.lane.b32.xlu0 %v392, 64
    %v401 = vpop.permute.xlu0 %400
    %v402 = vsel %vm294, %v401, 0
    %404 = vmatprep.subr.mxu0 %v271
    %405 = vmatpush1.msra.mxu0 %v270
    %406 = vmatprep.subr.mxu0 %v273
    %407 = vmatpush1.msra.mxu0 %v272
    %408 = vmatprep.subr.mxu0 %v275
    %409 = vmatpush1.msra.mxu0 %v274
    %410 = vmatprep.subr.mxu0 %v277
    %411 = vmatpush1.msra.mxu0 %v276
    %412 = vmatprep.subr.mxu0 %v279
    %413 = vmatpush1.msra.mxu0 %v278
    %414 = vmatprep.subr.mxu0 %v281
    %415 = vmatpush1.msra.mxu0 %v280
    %416 = vmatprep.subr.mxu0 %v283
    %417 = vmatpush1.msra.mxu0 %v282
    %418 = vmatprep.subr.mxu0 %v285
    %419 = vmatpush1.msra.mxu0 %v284
    %420 = vmatprep.subr.mxu0 0.0
    %421 = vmatpush1.msra.mxu0 0.0
    %422 = vmatprep.subr.mxu0 0.0
    %423 = vmatpush1.msra.mxu0 0.0
    %424 = vmatprep.subr.mxu0 0.0
    %425 = vmatpush1.msra.mxu0 0.0
    %426 = vmatprep.subr.mxu0 0.0
    %427 = vmatpush1.msra.mxu0 0.0
    %428 = vmatprep.subr.mxu0 0.0
    %429 = vmatpush1.msra.mxu0 0.0
    %430 = vmatprep.subr.mxu0 0.0
    %431 = vmatpush1.msra.mxu0 0.0
    %432 = vmatprep.subr.mxu0 0.0
    %433 = vmatpush1.msra.mxu0 0.0
    %434 = vmatprep.subr.mxu0 0.0
    %435 = vmatpush1.msra.mxu0 0.0
    %436 = vmatprep.subr.mxu0 0.0
    %437 = vmatpush1.msra.mxu0 0.0
    %438 = vmatprep.subr.mxu0 0.0
    %439 = vmatpush1.msra.mxu0 0.0
    %440 = vmatprep.subr.mxu0 0.0
    %441 = vmatpush1.msra.mxu0 0.0
    %442 = vmatprep.subr.mxu0 0.0
    %443 = vmatpush1.msra.mxu0 0.0
    %444 = vmatprep.subr.mxu0 0.0
    %445 = vmatpush1.msra.mxu0 0.0
    %446 = vmatprep.subr.mxu0 0.0
    %447 = vmatpush1.msra.mxu0 0.0
    %448 = vmatprep.subr.mxu0 0.0
    %449 = vmatpush1.msra.mxu0 0.0
    %450 = vmatprep.subr.mxu0 0.0
    %451 = vmatpush1.msra.mxu0 0.0
    %452 = vmatprep.subr.mxu0 0.0
    %453 = vmatpush1.msra.mxu0 0.0
    %454 = vmatprep.subr.mxu0 0.0
    %455 = vmatpush1.msra.mxu0 0.0
    %456 = vmatprep.subr.mxu0 0.0
    %457 = vmatpush1.msra.mxu0 0.0
    %458 = vmatprep.subr.mxu0 0.0
    %459 = vmatpush1.msra.mxu0 0.0
    %460 = vmatprep.subr.mxu0 0.0
    %461 = vmatpush1.msra.mxu0 0.0
    %462 = vmatprep.subr.mxu0 0.0
    %463 = vmatpush1.msra.mxu0 0.0
    %464 = vmatprep.subr.mxu0 0.0
    %465 = vmatpush1.msra.mxu0 0.0
    %466 = vmatprep.subr.mxu0 0.0
    %467 = vmatpush1.msra.mxu0 0.0
    %468 = vmatprep.mubr.f32.mxu0 0.0
    %469 = vmatmul.mubr.f32.gmra.mrb[0].mxu0 %v402
    %v470 = vpop.f32.mrb[0].mxu0
    %v471 = vadd.f32 0.0, %v470
    %v472 = vpop.f32.mrb[0].mxu0
    %v473 = vadd.f32 0.0, %v472
    %474 = vdwg.mxu0
    %v477 = vrot.slane %v471, 6
    %v478 = vrot.slane %v473, 6
    %v481 = vadd.f32 %v397, %v477
    %v482 = vadd.f32 %v398, %v478
    %v483 = vxor.u32 %v481, 2147483648
    %v484 = vmul.f32 %v483, 1.442695
    %v485 = vpow.pop %v484
    %v486 = vadd.f32 %v485, 1.0
    %v487 = vrcp.pop %v486
    %v488 = vmul.f32 1.0, %v487
    %v489 = vtanh.pop %v482
    %v490 = vxor.u32 %v482, 2147483648
    %v491 = vmul.f32 %v490, 1.442695
    %v492 = vpow.pop %v491
    %v493 = vadd.f32 %v492, 1.0
    %v494 = vrcp.pop %v493
    %v495 = vmul.f32 1.0, %v494
    %v497 = vrot.slane %v390, 6
    %v499 = vmul.f32 %v488, %v497
    %v500 = vmul.f32 %v488, %v489
    %502 = vrot.lane.b32.xlu0 %v500, 64
    %v503 = vpop.permute.xlu0 %502
    %v505 = vadd.f32 %v499, %v503
    %v506 = vtanh.pop %v505
    %v507 = vmul.f32 %v495, %v506
    %v509 = vrot.slane %v507, 2
    %510 = vrot.lane.b32.xlu0 %v509, 64
    %v511 = vpop.permute.xlu0 %510
    %v512 = vsel %vm294, %v511, 0
    %514 = vmatprep.subr.mxu0 %v271
    %515 = vmatpush1.msra.mxu0 %v270
    %516 = vmatprep.subr.mxu0 %v273
    %517 = vmatpush1.msra.mxu0 %v272
    %518 = vmatprep.subr.mxu0 %v275
    %519 = vmatpush1.msra.mxu0 %v274
    %520 = vmatprep.subr.mxu0 %v277
    %521 = vmatpush1.msra.mxu0 %v276
    %522 = vmatprep.subr.mxu0 %v279
    %523 = vmatpush1.msra.mxu0 %v278
    %524 = vmatprep.subr.mxu0 %v281
    %525 = vmatpush1.msra.mxu0 %v280
    %526 = vmatprep.subr.mxu0 %v283
    %527 = vmatpush1.msra.mxu0 %v282
    %528 = vmatprep.subr.mxu0 %v285
    %529 = vmatpush1.msra.mxu0 %v284
    %530 = vmatprep.subr.mxu0 0.0
    %531 = vmatpush1.msra.mxu0 0.0
    %532 = vmatprep.subr.mxu0 0.0
    %533 = vmatpush1.msra.mxu0 0.0
    %534 = vmatprep.subr.mxu0 0.0
    %535 = vmatpush1.msra.mxu0 0.0
    %536 = vmatprep.subr.mxu0 0.0
    %537 = vmatpush1.msra.mxu0 0.0
    %538 = vmatprep.subr.mxu0 0.0
    %539 = vmatpush1.msra.mxu0 0.0
    %540 = vmatprep.subr.mxu0 0.0
    %541 = vmatpush1.msra.mxu0 0.0
    %542 = vmatprep.subr.mxu0 0.0
    %543 = vmatpush1.msra.mxu0 0.0
    %544 = vmatprep.subr.mxu0 0.0
    %545 = vmatpush1.msra.mxu0 0.0
    %546 = vmatprep.subr.mxu0 0.0
    %547 = vmatpush1.msra.mxu0 0.0
    %548 = vmatprep.subr.mxu0 0.0
    %549 = vmatpush1.msra.mxu0 0.0
    %550 = vmatprep.subr.mxu0 0.0
    %551 = vmatpush1.msra.mxu0 0.0
    %552 = vmatprep.subr.mxu0 0.0
    %553 = vmatpush1.msra.mxu0 0.0
    %554 = vmatprep.subr.mxu0 0.0
    %555 = vmatpush1.msra.mxu0 0.0
    %556 = vmatprep.subr.mxu0 0.0
    %557 = vmatpush1.msra.mxu0 0.0
    %558 = vmatprep.subr.mxu0 0.0
    %559 = vmatpush1.msra.mxu0 0.0
    %560 = vmatprep.subr.mxu0 0.0
    %561 = vmatpush1.msra.mxu0 0.0
    %562 = vmatprep.subr.mxu0 0.0
    %563 = vmatpush1.msra.mxu0 0.0
    %564 = vmatprep.subr.mxu0 0.0
    %565 = vmatpush1.msra.mxu0 0.0
    %566 = vmatprep.subr.mxu0 0.0
    %567 = vmatpush1.msra.mxu0 0.0
    %568 = vmatprep.subr.mxu0 0.0
    %569 = vmatpush1.msra.mxu0 0.0
    %570 = vmatprep.subr.mxu0 0.0
    %571 = vmatpush1.msra.mxu0 0.0
    %572 = vmatprep.subr.mxu0 0.0
    %573 = vmatpush1.msra.mxu0 0.0
    %574 = vmatprep.subr.mxu0 0.0
    %575 = vmatpush1.msra.mxu0 0.0
    %576 = vmatprep.subr.mxu0 0.0
    %577 = vmatpush1.msra.mxu0 0.0
    %578 = vmatprep.mubr.f32.mxu0 0.0
    %579 = vmatmul.mubr.f32.gmra.mrb[0].mxu0 %v512
    %v580 = vpop.f32.mrb[0].mxu0
    %v581 = vadd.f32 0.0, %v580
    %v582 = vpop.f32.mrb[0].mxu0
    %v583 = vadd.f32 0.0, %v582
    %584 = vdwg.mxu0
    %v587 = vrot.slane %v581, 4
    %v588 = vrot.slane %v583, 4
    %v591 = vadd.f32 %v292, %v587
    %v592 = vadd.f32 %v293, %v588
    %v593 = vxor.u32 %v591, 2147483648
    %v594 = vmul.f32 %v593, 1.442695
    %v595 = vpow.pop %v594
    %v596 = vadd.f32 %v595, 1.0
    %v597 = vrcp.pop %v596
    %v598 = vmul.f32 1.0, %v597
    %v599 = vtanh.pop %v592
    %v600 = vxor.u32 %v592, 2147483648
    %v601 = vmul.f32 %v600, 1.442695
    %v602 = vpow.pop %v601
    %v603 = vadd.f32 %v602, 1.0
    %v604 = vrcp.pop %v603
    %v605 = vmul.f32 1.0, %v604
    %v607 = vrot.slane %v505, 6
    %v609 = vmul.f32 %v598, %v607
    %v610 = vmul.f32 %v598, %v599
    %612 = vrot.lane.b32.xlu0 %v610, 64
    %v613 = vpop.permute.xlu0 %612
    %v615 = vadd.f32 %v609, %v613
    %v616 = vtanh.pop %v615
    %v617 = vmul.f32 %v605, %v616
    %v619 = vrot.slane %v617, 4
    %620 = vrot.lane.b32.xlu0 %v619, 64
    %v621 = vpop.permute.xlu0 %620
    %v622 = vsel %vm294, %v621, 0
    %624 = vmatprep.subr.mxu0 %v271
    %625 = vmatpush1.msra.mxu0 %v270
    %626 = vmatprep.subr.mxu0 %v273
    %627 = vmatpush1.msra.mxu0 %v272
    %628 = vmatprep.subr.mxu0 %v275
    %629 = vmatpush1.msra.mxu0 %v274
    %630 = vmatprep.subr.mxu0 %v277
    %631 = vmatpush1.msra.mxu0 %v276
    %632 = vmatprep.subr.mxu0 %v279
    %633 = vmatpush1.msra.mxu0 %v278
    %634 = vmatprep.subr.mxu0 %v281
    %635 = vmatpush1.msra.mxu0 %v280
    %636 = vmatprep.subr.mxu0 %v283
    %637 = vmatpush1.msra.mxu0 %v282
    %638 = vmatprep.subr.mxu0 %v285
    %639 = vmatpush1.msra.mxu0 %v284
    %640 = vmatprep.subr.mxu0 0.0
    %641 = vmatpush1.msra.mxu0 0.0
    %642 = vmatprep.subr.mxu0 0.0
    %643 = vmatpush1.msra.mxu0 0.0
    %644 = vmatprep.subr.mxu0 0.0
    %645 = vmatpush1.msra.mxu0 0.0
    %646 = vmatprep.subr.mxu0 0.0
    %647 = vmatpush1.msra.mxu0 0.0
    %648 = vmatprep.subr.mxu0 0.0
    %649 = vmatpush1.msra.mxu0 0.0
    %650 = vmatprep.subr.mxu0 0.0
    %651 = vmatpush1.msra.mxu0 0.0
    %652 = vmatprep.subr.mxu0 0.0
    %653 = vmatpush1.msra.mxu0 0.0
    %654 = vmatprep.subr.mxu0 0.0
    %655 = vmatpush1.msra.mxu0 0.0
    %656 = vmatprep.subr.mxu0 0.0
    %657 = vmatpush1.msra.mxu0 0.0
    %658 = vmatprep.subr.mxu0 0.0
    %659 = vmatpush1.msra.mxu0 0.0
    %660 = vmatprep.subr.mxu0 0.0
    %661 = vmatpush1.msra.mxu0 0.0
    %662 = vmatprep.subr.mxu0 0.0
    %663 = vmatpush1.msra.mxu0 0.0
    %664 = vmatprep.subr.mxu0 0.0
    %665 = vmatpush1.msra.mxu0 0.0
    %666 = vmatprep.subr.mxu0 0.0
    %667 = vmatpush1.msra.mxu0 0.0
    %668 = vmatprep.subr.mxu0 0.0
    %669 = vmatpush1.msra.mxu0 0.0
    %670 = vmatprep.subr.mxu0 0.0
    %671 = vmatpush1.msra.mxu0 0.0
    %672 = vmatprep.subr.mxu0 0.0
    %673 = vmatpush1.msra.mxu0 0.0
    %674 = vmatprep.subr.mxu0 0.0
    %675 = vmatpush1.msra.mxu0 0.0
    %676 = vmatprep.subr.mxu0 0.0
    %677 = vmatpush1.msra.mxu0 0.0
    %678 = vmatprep.subr.mxu0 0.0
    %679 = vmatpush1.msra.mxu0 0.0
    %680 = vmatprep.subr.mxu0 0.0
    %681 = vmatpush1.msra.mxu0 0.0
    %682 = vmatprep.subr.mxu0 0.0
    %683 = vmatpush1.msra.mxu0 0.0
    %684 = vmatprep.subr.mxu0 0.0
    %685 = vmatpush1.msra.mxu0 0.0
    %686 = vmatprep.subr.mxu0 0.0
    %687 = vmatpush1.msra.mxu0 0.0
    %688 = vmatprep.mubr.f32.mxu0 0.0
    %689 = vmatmul.mubr.f32.gmra.mrb[0].mxu0 %v622
    %v690 = vpop.f32.mrb[0].mxu0
    %v691 = vadd.f32 0.0, %v690
    %v692 = vpop.f32.mrb[0].mxu0
    %v693 = vadd.f32 0.0, %v692
    %694 = vdwg.mxu0
    %v697 = vrot.slane %v691, 2
    %v698 = vrot.slane %v693, 2
    %v701 = vadd.f32 %v397, %v697
    %v702 = vadd.f32 %v398, %v698
    %v703 = vxor.u32 %v701, 2147483648
    %v704 = vmul.f32 %v703, 1.442695
    %v705 = vpow.pop %v704
    %v706 = vadd.f32 %v705, 1.0
    %v707 = vrcp.pop %v706
    %v708 = vmul.f32 1.0, %v707
    %v709 = vtanh.pop %v702
    %v710 = vxor.u32 %v702, 2147483648
    %v711 = vmul.f32 %v710, 1.442695
    %v712 = vpow.pop %v711
    %v713 = vadd.f32 %v712, 1.0
    %v714 = vrcp.pop %v713
    %v715 = vmul.f32 1.0, %v714
    %v717 = vrot.slane %v615, 6
    %v719 = vmul.f32 %v708, %v717
    %v720 = vmul.f32 %v708, %v709
    %722 = vrot.lane.b32.xlu0 %v720, 64
    %v723 = vpop.permute.xlu0 %722
    %v725 = vadd.f32 %v719, %v723
    %v726 = vtanh.pop %v725
    %v727 = vmul.f32 %v715, %v726
    %v730 = vrot.slane %v260, 6
    %v731 = vrot.slane %v262, 6
    %v734 = vadd.f32 %v169, %v730
    %v735 = vadd.f32 %v171, %v731
    %v737 = vrot.slane %v727, 6
    %738 = vrot.lane.b32.xlu0 %v737, 64
    %v739 = vpop.permute.xlu0 %738
    %v740 = vsel %vm294, %v739, 0
    %742 = vmatprep.subr.mxu0 %v271
    %743 = vmatpush1.msra.mxu0 %v270
    %744 = vmatprep.subr.mxu0 %v273
    %745 = vmatpush1.msra.mxu0 %v272
    %746 = vmatprep.subr.mxu0 %v275
    %747 = vmatpush1.msra.mxu0 %v274
    %748 = vmatprep.subr.mxu0 %v277
    %749 = vmatpush1.msra.mxu0 %v276
    %750 = vmatprep.subr.mxu0 %v279
    %751 = vmatpush1.msra.mxu0 %v278
    %752 = vmatprep.subr.mxu0 %v281
    %753 = vmatpush1.msra.mxu0 %v280
    %754 = vmatprep.subr.mxu0 %v283
    %755 = vmatpush1.msra.mxu0 %v282
    %756 = vmatprep.subr.mxu0 %v285
    %757 = vmatpush1.msra.mxu0 %v284
    %758 = vmatprep.subr.mxu0 0.0
    %759 = vmatpush1.msra.mxu0 0.0
    %760 = vmatprep.subr.mxu0 0.0
    %761 = vmatpush1.msra.mxu0 0.0
    %762 = vmatprep.subr.mxu0 0.0
    %763 = vmatpush1.msra.mxu0 0.0
    %764 = vmatprep.subr.mxu0 0.0
    %765 = vmatpush1.msra.mxu0 0.0
    %766 = vmatprep.subr.mxu0 0.0
    %767 = vmatpush1.msra.mxu0 0.0
    %768 = vmatprep.subr.mxu0 0.0
    %769 = vmatpush1.msra.mxu0 0.0
    %770 = vmatprep.subr.mxu0 0.0
    %771 = vmatpush1.msra.mxu0 0.0
    %772 = vmatprep.subr.mxu0 0.0
    %773 = vmatpush1.msra.mxu0 0.0
    %774 = vmatprep.subr.mxu0 0.0
    %775 = vmatpush1.msra.mxu0 0.0
    %776 = vmatprep.subr.mxu0 0.0
    %777 = vmatpush1.msra.mxu0 0.0
    %778 = vmatprep.subr.mxu0 0.0
    %779 = vmatpush1.msra.mxu0 0.0
    %780 = vmatprep.subr.mxu0 0.0
    %781 = vmatpush1.msra.mxu0 0.0
    %782 = vmatprep.subr.mxu0 0.0
    %783 = vmatpush1.msra.mxu0 0.0
    %784 = vmatprep.subr.mxu0 0.0
    %785 = vmatpush1.msra.mxu0 0.0
    %786 = vmatprep.subr.mxu0 0.0
    %787 = vmatpush1.msra.mxu0 0.0
    %788 = vmatprep.subr.mxu0 0.0
    %789 = vmatpush1.msra.mxu0 0.0
    %790 = vmatprep.subr.mxu0 0.0
    %791 = vmatpush1.msra.mxu0 0.0
    %792 = vmatprep.subr.mxu0 0.0
    %793 = vmatpush1.msra.mxu0 0.0
    %794 = vmatprep.subr.mxu0 0.0
    %795 = vmatpush1.msra.mxu0 0.0
    %796 = vmatprep.subr.mxu0 0.0
    %797 = vmatpush1.msra.mxu0 0.0
    %798 = vmatprep.subr.mxu0 0.0
    %799 = vmatpush1.msra.mxu0 0.0
    %800 = vmatprep.subr.mxu0 0.0
    %801 = vmatpush1.msra.mxu0 0.0
    %802 = vmatprep.subr.mxu0 0.0
    %803 = vmatpush1.msra.mxu0 0.0
    %804 = vmatprep.subr.mxu0 0.0
    %805 = vmatpush1.msra.mxu0 0.0
    %806 = vmatprep.mubr.f32.mxu0 0.0
    %807 = vmatmul.mubr.f32.gmra.mrb[0].mxu0 %v740
    %v808 = vpop.f32.mrb[0].mxu0
    %v809 = vadd.f32 0.0, %v808
    %v810 = vpop.f32.mrb[0].mxu0
    %v811 = vadd.f32 0.0, %v810
    %812 = vdwg.mxu0
    %v813 = vadd.f32 %v734, %v809
    %v814 = vadd.f32 %v735, %v811
    %v815 = vxor.u32 %v813, 2147483648
    %v816 = vmul.f32 %v815, 1.442695
    %v817 = vpow.pop %v816
    %v818 = vadd.f32 %v817, 1.0
    %v819 = vrcp.pop %v818
    %v820 = vmul.f32 1.0, %v819
    %v821 = vtanh.pop %v814
    %v822 = vxor.u32 %v814, 2147483648
    %v823 = vmul.f32 %v822, 1.442695
    %v824 = vpow.pop %v823
    %v825 = vadd.f32 %v824, 1.0
    %v826 = vrcp.pop %v825
    %v827 = vmul.f32 1.0, %v826
    %v829 = vrot.slane %v725, 6
    %v831 = vmul.f32 %v820, %v829
    %v832 = vmul.f32 %v820, %v821
    %834 = vrot.lane.b32.xlu0 %v832, 64
    %v835 = vpop.permute.xlu0 %834
    %v837 = vadd.f32 %v831, %v835
    %v838 = vtanh.pop %v837
    %v839 = vmul.f32 %v827, %v838
    %v840 = vrot.slane %v260, 2
    %v841 = vrot.slane %v262, 2
    %v844 = vadd.f32 %v169, %v840
    %v845 = vadd.f32 %v171, %v841
    %847 = vrot.lane.b32.xlu0 %v839, 64
    %v848 = vpop.permute.xlu0 %847
    %v849 = vsel %vm294, %v848, 0
    %851 = vmatprep.subr.mxu0 %v271
    %852 = vmatpush1.msra.mxu0 %v270
    %853 = vmatprep.subr.mxu0 %v273
    %854 = vmatpush1.msra.mxu0 %v272
    %855 = vmatprep.subr.mxu0 %v275
    %856 = vmatpush1.msra.mxu0 %v274
    %857 = vmatprep.subr.mxu0 %v277
    %858 = vmatpush1.msra.mxu0 %v276
    %859 = vmatprep.subr.mxu0 %v279
    %860 = vmatpush1.msra.mxu0 %v278
    %861 = vmatprep.subr.mxu0 %v281
    %862 = vmatpush1.msra.mxu0 %v280
    %863 = vmatprep.subr.mxu0 %v283
    %864 = vmatpush1.msra.mxu0 %v282
    %865 = vmatprep.subr.mxu0 %v285
    %866 = vmatpush1.msra.mxu0 %v284
    %867 = vmatprep.subr.mxu0 0.0
    %868 = vmatpush1.msra.mxu0 0.0
    %869 = vmatprep.subr.mxu0 0.0
    %870 = vmatpush1.msra.mxu0 0.0
    %871 = vmatprep.subr.mxu0 0.0
    %872 = vmatpush1.msra.mxu0 0.0
    %873 = vmatprep.subr.mxu0 0.0
    %874 = vmatpush1.msra.mxu0 0.0
    %875 = vmatprep.subr.mxu0 0.0
    %876 = vmatpush1.msra.mxu0 0.0
    %877 = vmatprep.subr.mxu0 0.0
    %878 = vmatpush1.msra.mxu0 0.0
    %879 = vmatprep.subr.mxu0 0.0
    %880 = vmatpush1.msra.mxu0 0.0
    %881 = vmatprep.subr.mxu0 0.0
    %882 = vmatpush1.msra.mxu0 0.0
    %883 = vmatprep.subr.mxu0 0.0
    %884 = vmatpush1.msra.mxu0 0.0
    %885 = vmatprep.subr.mxu0 0.0
    %886 = vmatpush1.msra.mxu0 0.0
    %887 = vmatprep.subr.mxu0 0.0
    %888 = vmatpush1.msra.mxu0 0.0
    %889 = vmatprep.subr.mxu0 0.0
    %890 = vmatpush1.msra.mxu0 0.0
    %891 = vmatprep.subr.mxu0 0.0
    %892 = vmatpush1.msra.mxu0 0.0
    %893 = vmatprep.subr.mxu0 0.0
    %894 = vmatpush1.msra.mxu0 0.0
    %895 = vmatprep.subr.mxu0 0.0
    %896 = vmatpush1.msra.mxu0 0.0
    %897 = vmatprep.subr.mxu0 0.0
    %898 = vmatpush1.msra.mxu0 0.0
    %899 = vmatprep.subr.mxu0 0.0
    %900 = vmatpush1.msra.mxu0 0.0
    %901 = vmatprep.subr.mxu0 0.0
    %902 = vmatpush1.msra.mxu0 0.0
    %903 = vmatprep.subr.mxu0 0.0
    %904 = vmatpush1.msra.mxu0 0.0
    %905 = vmatprep.subr.mxu0 0.0
    %906 = vmatpush1.msra.mxu0 0.0
    %907 = vmatprep.subr.mxu0 0.0
    %908 = vmatpush1.msra.mxu0 0.0
    %909 = vmatprep.subr.mxu0 0.0
    %910 = vmatpush1.msra.mxu0 0.0
    %911 = vmatprep.subr.mxu0 0.0
    %912 = vmatpush1.msra.mxu0 0.0
    %913 = vmatprep.subr.mxu0 0.0
    %914 = vmatpush1.msra.mxu0 0.0
    %915 = vmatprep.mubr.f32.mxu0 0.0
    %916 = vmatmul.mubr.f32.gmra.mrb[0].mxu0 %v849
    %v917 = vpop.f32.mrb[0].mxu0
    %v918 = vadd.f32 0.0, %v917
    %v919 = vpop.f32.mrb[0].mxu0
    %v920 = vadd.f32 0.0, %v919
    %921 = vdwg.mxu0
    %v924 = vrot.slane %v918, 6
    %v925 = vrot.slane %v920, 6
    %v928 = vadd.f32 %v844, %v924
    %v929 = vadd.f32 %v845, %v925
    %v930 = vxor.u32 %v928, 2147483648
    %v931 = vmul.f32 %v930, 1.442695
    %v932 = vpow.pop %v931
    %v933 = vadd.f32 %v932, 1.0
    %v934 = vrcp.pop %v933
    %v935 = vmul.f32 1.0, %v934
    %v936 = vtanh.pop %v929
    %v937 = vxor.u32 %v929, 2147483648
    %v938 = vmul.f32 %v937, 1.442695
    %v939 = vpow.pop %v938
    %v940 = vadd.f32 %v939, 1.0
    %v941 = vrcp.pop %v940
    %v942 = vmul.f32 1.0, %v941
    %v944 = vrot.slane %v837, 6
    %v946 = vmul.f32 %v935, %v944
    %v947 = vmul.f32 %v935, %v936
    %949 = vrot.lane.b32.xlu0 %v947, 64
    %v950 = vpop.permute.xlu0 %949
    %v952 = vadd.f32 %v946, %v950
    %v953 = vtanh.pop %v952
    %v954 = vmul.f32 %v942, %v953
    %v956 = vrot.slane %v954, 2
    %957 = vrot.lane.b32.xlu0 %v956, 64
    %v958 = vpop.permute.xlu0 %957
    %v959 = vsel %vm294, %v958, 0
    %961 = vmatprep.subr.mxu0 %v271
    %962 = vmatpush1.msra.mxu0 %v270
    %963 = vmatprep.subr.mxu0 %v273
    %964 = vmatpush1.msra.mxu0 %v272
    %965 = vmatprep.subr.mxu0 %v275
    %966 = vmatpush1.msra.mxu0 %v274
    %967 = vmatprep.subr.mxu0 %v277
    %968 = vmatpush1.msra.mxu0 %v276
    %969 = vmatprep.subr.mxu0 %v279
    %970 = vmatpush1.msra.mxu0 %v278
    %971 = vmatprep.subr.mxu0 %v281
    %972 = vmatpush1.msra.mxu0 %v280
    %973 = vmatprep.subr.mxu0 %v283
    %974 = vmatpush1.msra.mxu0 %v282
    %975 = vmatprep.subr.mxu0 %v285
    %976 = vmatpush1.msra.mxu0 %v284
    %977 = vmatprep.subr.mxu0 0.0
    %978 = vmatpush1.msra.mxu0 0.0
    %979 = vmatprep.subr.mxu0 0.0
    %980 = vmatpush1.msra.mxu0 0.0
    %981 = vmatprep.subr.mxu0 0.0
    %982 = vmatpush1.msra.mxu0 0.0
    %983 = vmatprep.subr.mxu0 0.0
    %984 = vmatpush1.msra.mxu0 0.0
    %985 = vmatprep.subr.mxu0 0.0
    %986 = vmatpush1.msra.mxu0 0.0
    %987 = vmatprep.subr.mxu0 0.0
    %988 = vmatpush1.msra.mxu0 0.0
    %989 = vmatprep.subr.mxu0 0.0
    %990 = vmatpush1.msra.mxu0 0.0
    %991 = vmatprep.subr.mxu0 0.0
    %992 = vmatpush1.msra.mxu0 0.0
    %993 = vmatprep.subr.mxu0 0.0
    %994 = vmatpush1.msra.mxu0 0.0
    %995 = vmatprep.subr.mxu0 0.0
    %996 = vmatpush1.msra.mxu0 0.0
    %997 = vmatprep.subr.mxu0 0.0
    %998 = vmatpush1.msra.mxu0 0.0
    %999 = vmatprep.subr.mxu0 0.0
    %1000 = vmatpush1.msra.mxu0 0.0
    %1001 = vmatprep.subr.mxu0 0.0
    %1002 = vmatpush1.msra.mxu0 0.0
    %1003 = vmatprep.subr.mxu0 0.0
    %1004 = vmatpush1.msra.mxu0 0.0
    %1005 = vmatprep.subr.mxu0 0.0
    %1006 = vmatpush1.msra.mxu0 0.0
    %1007 = vmatprep.subr.mxu0 0.0
    %1008 = vmatpush1.msra.mxu0 0.0
    %1009 = vmatprep.subr.mxu0 0.0
    %1010 = vmatpush1.msra.mxu0 0.0
    %1011 = vmatprep.subr.mxu0 0.0
    %1012 = vmatpush1.msra.mxu0 0.0
    %1013 = vmatprep.subr.mxu0 0.0
    %1014 = vmatpush1.msra.mxu0 0.0
    %1015 = vmatprep.subr.mxu0 0.0
    %1016 = vmatpush1.msra.mxu0 0.0
    %1017 = vmatprep.subr.mxu0 0.0
    %1018 = vmatpush1.msra.mxu0 0.0
    %1019 = vmatprep.subr.mxu0 0.0
    %1020 = vmatpush1.msra.mxu0 0.0
    %1021 = vmatprep.subr.mxu0 0.0
    %1022 = vmatpush1.msra.mxu0 0.0
    %1023 = vmatprep.subr.mxu0 0.0
    %1024 = vmatpush1.msra.mxu0 0.0
    %1025 = vmatprep.mubr.f32.mxu0 0.0
    %1026 = vmatmul.mubr.f32.gmra.mrb[0].mxu0 %v959
    %v1027 = vpop.f32.mrb[0].mxu0
    %v1028 = vadd.f32 0.0, %v1027
    %v1029 = vpop.f32.mrb[0].mxu0
    %v1030 = vadd.f32 0.0, %v1029
    %1031 = vdwg.mxu0
    %v1034 = vrot.slane %v1028, 4
    %v1035 = vrot.slane %v1030, 4
    %v1038 = vadd.f32 %v734, %v1034
    %v1039 = vadd.f32 %v735, %v1035
    %v1040 = vxor.u32 %v1038, 2147483648
    %v1041 = vmul.f32 %v1040, 1.442695
    %v1042 = vpow.pop %v1041
    %v1043 = vadd.f32 %v1042, 1.0
    %v1044 = vrcp.pop %v1043
    %v1045 = vmul.f32 1.0, %v1044
    %v1046 = vtanh.pop %v1039
    %v1047 = vxor.u32 %v1039, 2147483648
    %v1048 = vmul.f32 %v1047, 1.442695
    %v1049 = vpow.pop %v1048
    %v1050 = vadd.f32 %v1049, 1.0
    %v1051 = vrcp.pop %v1050
    %v1052 = vmul.f32 1.0, %v1051
    %v1054 = vrot.slane %v952, 6
    %v1056 = vmul.f32 %v1045, %v1054
    %v1057 = vmul.f32 %v1045, %v1046
    %1059 = vrot.lane.b32.xlu0 %v1057, 64
    %v1060 = vpop.permute.xlu0 %1059
    %v1062 = vadd.f32 %v1056, %v1060
    %v1063 = vtanh.pop %v1062
    %v1064 = vmul.f32 %v1052, %v1063
    %v1066 = vrot.slane %v1064, 4
    %1067 = vrot.lane.b32.xlu0 %v1066, 64
    %v1068 = vpop.permute.xlu0 %1067
    %v1069 = vsel %vm294, %v1068, 0
    %1071 = vmatprep.subr.mxu0 %v271
    %1072 = vmatpush1.msra.mxu0 %v270
    %1073 = vmatprep.subr.mxu0 %v273
    %1074 = vmatpush1.msra.mxu0 %v272
    %1075 = vmatprep.subr.mxu0 %v275
    %1076 = vmatpush1.msra.mxu0 %v274
    %1077 = vmatprep.subr.mxu0 %v277
    %1078 = vmatpush1.msra.mxu0 %v276
    %1079 = vmatprep.subr.mxu0 %v279
    %1080 = vmatpush1.msra.mxu0 %v278
    %1081 = vmatprep.subr.mxu0 %v281
    %1082 = vmatpush1.msra.mxu0 %v280
    %1083 = vmatprep.subr.mxu0 %v283
    %1084 = vmatpush1.msra.mxu0 %v282
    %1085 = vmatprep.subr.mxu0 %v285
    %1086 = vmatpush1.msra.mxu0 %v284
    %1087 = vmatprep.subr.mxu0 0.0
    %1088 = vmatpush1.msra.mxu0 0.0
    %1089 = vmatprep.subr.mxu0 0.0
    %1090 = vmatpush1.msra.mxu0 0.0
    %1091 = vmatprep.subr.mxu0 0.0
    %1092 = vmatpush1.msra.mxu0 0.0
    %1093 = vmatprep.subr.mxu0 0.0
    %1094 = vmatpush1.msra.mxu0 0.0
    %1095 = vmatprep.subr.mxu0 0.0
    %1096 = vmatpush1.msra.mxu0 0.0
    %1097 = vmatprep.subr.mxu0 0.0
    %1098 = vmatpush1.msra.mxu0 0.0
    %1099 = vmatprep.subr.mxu0 0.0
    %1100 = vmatpush1.msra.mxu0 0.0
    %1101 = vmatprep.subr.mxu0 0.0
    %1102 = vmatpush1.msra.mxu0 0.0
    %1103 = vmatprep.subr.mxu0 0.0
    %1104 = vmatpush1.msra.mxu0 0.0
    %1105 = vmatprep.subr.mxu0 0.0
    %1106 = vmatpush1.msra.mxu0 0.0
    %1107 = vmatprep.subr.mxu0 0.0
    %1108 = vmatpush1.msra.mxu0 0.0
    %1109 = vmatprep.subr.mxu0 0.0
    %1110 = vmatpush1.msra.mxu0 0.0
    %1111 = vmatprep.subr.mxu0 0.0
    %1112 = vmatpush1.msra.mxu0 0.0
    %1113 = vmatprep.subr.mxu0 0.0
    %1114 = vmatpush1.msra.mxu0 0.0
    %1115 = vmatprep.subr.mxu0 0.0
    %1116 = vmatpush1.msra.mxu0 0.0
    %1117 = vmatprep.subr.mxu0 0.0
    %1118 = vmatpush1.msra.mxu0 0.0
    %1119 = vmatprep.subr.mxu0 0.0
    %1120 = vmatpush1.msra.mxu0 0.0
    %1121 = vmatprep.subr.mxu0 0.0
    %1122 = vmatpush1.msra.mxu0 0.0
    %1123 = vmatprep.subr.mxu0 0.0
    %1124 = vmatpush1.msra.mxu0 0.0
    %1125 = vmatprep.subr.mxu0 0.0
    %1126 = vmatpush1.msra.mxu0 0.0
    %1127 = vmatprep.subr.mxu0 0.0
    %1128 = vmatpush1.msra.mxu0 0.0
    %1129 = vmatprep.subr.mxu0 0.0
    %1130 = vmatpush1.msra.mxu0 0.0
    %1131 = vmatprep.subr.mxu0 0.0
    %1132 = vmatpush1.msra.mxu0 0.0
    %1133 = vmatprep.subr.mxu0 0.0
    %1134 = vmatpush1.msra.mxu0 0.0
    %1135 = vmatprep.mubr.f32.mxu0 0.0
    %1136 = vmatmul.mubr.f32.gmra.mrb[0].mxu0 %v1069
    %v1137 = vpop.f32.mrb[0].mxu0
    %v1138 = vadd.f32 0.0, %v1137
    %v1139 = vpop.f32.mrb[0].mxu0
    %v1140 = vadd.f32 0.0, %v1139
    %1141 = vdwg.mxu0
    %v1144 = vrot.slane %v1138, 2
    %v1145 = vrot.slane %v1140, 2
    %v1148 = vadd.f32 %v844, %v1144
    %v1149 = vadd.f32 %v845, %v1145
    %v1150 = vxor.u32 %v1148, 2147483648
    %v1151 = vmul.f32 %v1150, 1.442695
    %v1152 = vpow.pop %v1151
    %v1153 = vadd.f32 %v1152, 1.0
    %v1154 = vrcp.pop %v1153
    %v1155 = vmul.f32 1.0, %v1154
    %v1156 = vtanh.pop %v1149
    %v1157 = vxor.u32 %v1149, 2147483648
    %v1158 = vmul.f32 %v1157, 1.442695
    %v1159 = vpow.pop %v1158
    %v1160 = vadd.f32 %v1159, 1.0
    %v1161 = vrcp.pop %v1160
    %v1162 = vmul.f32 1.0, %v1161
    %v1164 = vrot.slane %v1062, 6
    %v1166 = vmul.f32 %v1155, %v1164
    %v1167 = vmul.f32 %v1155, %v1156
    %1169 = vrot.lane.b32.xlu0 %v1167, 64
    %v1170 = vpop.permute.xlu0 %1169
    %v1172 = vadd.f32 %v1166, %v1170
    %v1173 = vtanh.pop %v1172
    %v1174 = vmul.f32 %v1162, %v1173
    %v1175 = vld [vmem:[%s4] sm:$0xff]
    %v1176 = vld [vmem:[%s4 + $0x8] sm:$0xff]
    %v1177 = vld [vmem:[%s4 + $0x10] sm:$0xff]
    %v1178 = vld [vmem:[%s4 + $0x18] sm:$0xff]
    %v1179 = vld [vmem:[%s4 + $0x20] sm:$0xff]
    %v1180 = vld [vmem:[%s4 + $0x28] sm:$0xff]
    %v1181 = vld [vmem:[%s4 + $0x30] sm:$0xff]
    %v1182 = vld [vmem:[%s4 + $0x38] sm:$0xff]
    %v1183 = vld [vmem:[%s5] sm:$0x1]
    %v1185 = vlaneseq
    %v1186 = vshrl.u32 %v1185, 7
    %v1187 = vsub.s32 0, %v1186
    %v1188 = vrot.slane %v1183, %v1187
    %v1191 = vrot.slane %v1174, 6
    %1192 = vrot.lane.b32.xlu0 %v1191, 64
    %v1193 = vpop.permute.xlu0 %1192
    %v1194 = vsel %vm294, %v1193, 0
    %1196 = vmatprep.subr.mxu0 0.0
    %1197 = vmatpush1.msra.mxu0 %v1175
    %1198 = vmatprep.subr.mxu0 0.0
    %1199 = vmatpush1.msra.mxu0 %v1176
    %1200 = vmatprep.subr.mxu0 0.0
    %1201 = vmatpush1.msra.mxu0 %v1177
    %1202 = vmatprep.subr.mxu0 0.0
    %1203 = vmatpush1.msra.mxu0 %v1178
    %1204 = vmatprep.subr.mxu0 0.0
    %1205 = vmatpush1.msra.mxu0 %v1179
    %1206 = vmatprep.subr.mxu0 0.0
    %1207 = vmatpush1.msra.mxu0 %v1180
    %1208 = vmatprep.subr.mxu0 0.0
    %1209 = vmatpush1.msra.mxu0 %v1181
    %1210 = vmatprep.subr.mxu0 0.0
    %1211 = vmatpush1.msra.mxu0 %v1182
    %1212 = vmatprep.subr.mxu0 0.0
    %1213 = vmatpush1.msra.mxu0 0.0
    %1214 = vmatprep.subr.mxu0 0.0
    %1215 = vmatpush1.msra.mxu0 0.0
    %1216 = vmatprep.subr.mxu0 0.0
    %1217 = vmatpush1.msra.mxu0 0.0
    %1218 = vmatprep.subr.mxu0 0.0
    %1219 = vmatpush1.msra.mxu0 0.0
    %1220 = vmatprep.subr.mxu0 0.0
    %1221 = vmatpush1.msra.mxu0 0.0
    %1222 = vmatprep.subr.mxu0 0.0
    %1223 = vmatpush1.msra.mxu0 0.0
    %1224 = vmatprep.subr.mxu0 0.0
    %1225 = vmatpush1.msra.mxu0 0.0
    %1226 = vmatprep.subr.mxu0 0.0
    %1227 = vmatpush1.msra.mxu0 0.0
    %1228 = vmatprep.subr.mxu0 0.0
    %1229 = vmatpush1.msra.mxu0 0.0
    %1230 = vmatprep.subr.mxu0 0.0
    %1231 = vmatpush1.msra.mxu0 0.0
    %1232 = vmatprep.subr.mxu0 0.0
    %1233 = vmatpush1.msra.mxu0 0.0
    %1234 = vmatprep.subr.mxu0 0.0
    %1235 = vmatpush1.msra.mxu0 0.0
    %1236 = vmatprep.subr.mxu0 0.0
    %1237 = vmatpush1.msra.mxu0 0.0
    %1238 = vmatprep.subr.mxu0 0.0
    %1239 = vmatpush1.msra.mxu0 0.0
    %1240 = vmatprep.subr.mxu0 0.0
    %1241 = vmatpush1.msra.mxu0 0.0
    %1242 = vmatprep.subr.mxu0 0.0
    %1243 = vmatpush1.msra.mxu0 0.0
    %1244 = vmatprep.subr.mxu0 0.0
    %1245 = vmatpush1.msra.mxu0 0.0
    %1246 = vmatprep.subr.mxu0 0.0
    %1247 = vmatpush1.msra.mxu0 0.0
    %1248 = vmatprep.subr.mxu0 0.0
    %1249 = vmatpush1.msra.mxu0 0.0
    %1250 = vmatprep.subr.mxu0 0.0
    %1251 = vmatpush1.msra.mxu0 0.0
    %1252 = vmatprep.subr.mxu0 0.0
    %1253 = vmatpush1.msra.mxu0 0.0
    %1254 = vmatprep.subr.mxu0 0.0
    %1255 = vmatpush1.msra.mxu0 0.0
    %1256 = vmatprep.subr.mxu0 0.0
    %1257 = vmatpush1.msra.mxu0 0.0
    %1258 = vmatprep.subr.mxu0 0.0
    %1259 = vmatpush1.msra.mxu0 0.0
    %1260 = vmatprep.mubr.f32.mxu0 0.0
    %1261 = vmatmul.mubr.f32.gmra.mrb[0].mxu0 %v1194
    %v1262 = vpop.f32.mrb[0].mxu0
    %v1263 = vadd.f32 %v1188, %v1262
    %v1264 = vpop.f32.mrb[0].mxu0
    %1265 = vdwg.mxu0
    %vm1266 = vcmask 25600
    %1267 = vst.msk [vmem:[#allocation7] sm:$0x3] %vm1266, %v1263
    // Predicated region
    $region34: #{lstm_classifier_forward.1} parent=1 // pred_check
      _
    $region35: #{lstm_classifier_forward.1} parent=1 // pred_check_branch
      %1269 = sbr.rel (0) target = $region37
    $region36: #{lstm_classifier_forward.1} parent=1 // pred_region
      %s1271 = ssub.s32 32, 32
      %1272 = vsyncadd [#allocation4], %s1271
      %s1274 = sshll.u32 [#allocation7], 4
      %s1275 = int_to_ptr.vmem [resolvable:$true] %s1274
      %1277 = dma.vmem_to_hbm [thread:$0]  %s1275, 32, %s6, [#allocation4]
    $region37: #{lstm_classifier_forward.1} parent=1 // pred_fallthru
      _
    // Predicated region
    $region38: #{lstm_classifier_forward.1} parent=1 // pred_check
      _
    $region39: #{lstm_classifier_forward.1} parent=1 // pred_check_branch
      %1279 = sbr.rel (0) target = $region41
    $region40: #{lstm_classifier_forward.1} parent=1 // pred_region
      %1280 = dma.done [#allocation4], 32
    $region41: #{lstm_classifier_forward.1} parent=1 // pred_fallthru
      _
    %1281 = vsyncpa [#allocation3], 1
    %1282 = vsyncpa [#allocation6], 1
    %1283 = vsyncpa [#allocation4], 1

</llo_original>
